<compile_context>
chip_gen: v6e
topology: v6e:2x2x1
jax: 0.10.0
libtpu: 0.0.40
codegen_flags: <defaults>
</compile_context>

<pallas_src>
import math

import jax
import jax.numpy as jnp
from jax import lax
from jax.experimental import pallas as pl
from jax.experimental.pallas import tpu as pltpu

H = 128            # hidden_size (small, lane-aligned stand-in for 512)
D_SEM = 2048       # semantic feature dim (fixed by the module: Linear(2048, H))
N_PROJ = 5         # number of scalar position features (fixed by the module)
NPOS_PAD = 8       # position scalars zero-padded to one sublane group (tiny)
LN_EPS = 1e-5
TILE_N_MAX = 1024  # rows per grid step (f32 sem tile 8 MiB x2 buffers ~ 16 MiB)


def _round_up(x, m):
    return ((x + m - 1) // m) * m


def _choose_tile(n):
    # Even number of grid steps so v7x's two TensorCores split the "parallel"
    # axis evenly, capped at TILE_N_MAX rows, rounded to a multiple of 8 sublanes.
    steps = 2 * pl.cdiv(n, 2 * TILE_N_MAX)
    return max(8, min(TILE_N_MAX, _round_up(pl.cdiv(n, steps), 8)))


def _layer_norm(x, gamma, beta):
    mu = jnp.mean(x, axis=-1, keepdims=True)
    var = jnp.mean((x - mu) * (x - mu), axis=-1, keepdims=True)
    return (x - mu) * lax.rsqrt(var + LN_EPS) * gamma + beta


def embedder_kernel(sem_ref, pos_ref, wpos_ref, sW1_ref, w4_ref, vecs_ref, out_ref):
    vecs = vecs_ref[...]                                   # (12, H) f32
    pb1, pb2, pg, pbt = vecs[0:1], vecs[1:2], vecs[2:3], vecs[3:4]
    sb1, sb2, sg, sbt = vecs[4:5], vecs[5:6], vecs[6:7], vecs[7:8]
    fb1, fb2, fg, fbt = vecs[8:9], vecs[9:10], vecs[10:11], vecs[11:12]

    # four (H, H) bf16 weights packed into one (4H, H) slab (static slices)
    pW2 = w4_ref[0 * H:1 * H, :]
    sW2 = w4_ref[1 * H:2 * H, :]
    fW1 = w4_ref[2 * H:3 * H, :]
    fW2 = w4_ref[3 * H:4 * H, :]

    # ---- position path: 5 scalar->H projections + first Linear(5H,H), folded
    # into a single (TILE_N,8)@(8,H) matmul (algebra done in the wrapper) ----
    h = jnp.dot(pos_ref[...], wpos_ref[...],
                preferred_element_type=jnp.float32) + pb1
    h = jnp.maximum(h, 0.0)
    h = jnp.dot(h.astype(jnp.bfloat16), pW2,
                preferred_element_type=jnp.float32) + pb2
    pos_out = _layer_norm(h, pg, pbt)

    # ---- semantic path: f32 HBM read, in-kernel bf16 cast, f32 MXU accumulate ----
    s = jnp.dot(sem_ref[...].astype(jnp.bfloat16), sW1_ref[...],
                preferred_element_type=jnp.float32) + sb1
    s = jnp.maximum(s, 0.0)
    s = jnp.dot(s.astype(jnp.bfloat16), sW2,
                preferred_element_type=jnp.float32) + sb2
    sem_out = _layer_norm(s, sg, sbt)

    # ---- final ffn on the sum ----
    x = (sem_out + pos_out).astype(jnp.bfloat16)
    f = jnp.dot(x, fW1, preferred_element_type=jnp.float32) + fb1
    f = jnp.maximum(f, 0.0)
    f = jnp.dot(f.astype(jnp.bfloat16), fW2,
                preferred_element_type=jnp.float32) + fb2
    out_ref[...] = _layer_norm(f, fg, fbt).astype(out_ref.dtype)


@jax.jit
def image_region_embedder(semantic_features, position_features, params):
    """semantic_features: (B, R, 2048) f32, position_features: (B, R, 5) f32."""
    B, R, _ = semantic_features.shape
    N = B * R

    # Token-major views: NO dtype cast and NO row padding of the semantic slab
    # (reshape of contiguous data is free), so it is read from HBM exactly once.
    sem = semantic_features.reshape(N, D_SEM)
    # position scalars: pad 5 -> 8 lanes only (32 B/row, negligible)
    pos = jnp.pad(position_features.reshape(N, N_PROJ).astype(jnp.float32),
                  ((0, 0), (0, NPOS_PAD - N_PROJ)))

    # ---- fold 5x Linear(1,H) + concat + Linear(5H,H) into one (8,H) matmul:
    #   W_fold[i,:] = w_proj[i] @ pW1[i*H:(i+1)*H]
    #   b_fold      = sum_i b_proj[i] @ pW1[i*H:(i+1)*H] + pb1
    pW1_blk = params["pW1"].reshape(N_PROJ, H, H)
    W_fold = jnp.einsum("ih,iho->io", params["w_proj"], pW1_blk)            # (5, H)
    b_fold = jnp.einsum("ih,iho->o", params["b_proj"], pW1_blk)[None, :] + params["pb1"]
    W_fold = jnp.pad(W_fold, ((0, NPOS_PAD - N_PROJ), (0, 0)))              # (8, H)

    # pack the twelve (1,H) bias / LayerNorm vectors into a single (12,H) slab
    vecs = jnp.concatenate([
        b_fold, params["pb2"], params["pg"], params["pbt"],
        params["sb1"], params["sb2"], params["sg"], params["sbt"],
        params["fb1"], params["fb2"], params["fg"], params["fbt"],
    ], axis=0)

    sW1 = params["sW1"].astype(jnp.bfloat16)                                # (2048, H)
    w4 = jnp.concatenate([params["pW2"], params["sW2"],
                          params["fW1"], params["fW2"]],
                         axis=0).astype(jnp.bfloat16)                        # (4H, H)

    tile_n = _choose_tile(N)
    grid = (pl.cdiv(N, tile_n),)       # partial last block masked on writeback

    def row_map(i):
        return (i, 0)

    def const_map(i):
        return (0, 0)

    flops = 2 * N * (D_SEM * H + NPOS_PAD * H + 4 * H * H)
    bytes_accessed = (N * (D_SEM + NPOS_PAD + H) * 4
                      + D_SEM * H * 2 + 4 * H * H * 2
                      + (NPOS_PAD + 12) * H * 4)

    out = pl.pallas_call(
        embedder_kernel,
        out_shape=jax.ShapeDtypeStruct((N, H), jnp.float32),
        grid=grid,
        in_specs=[
            pl.BlockSpec((tile_n, D_SEM), row_map),      # semantic (f32, cast in-kernel)
            pl.BlockSpec((tile_n, NPOS_PAD), row_map),   # position scalars
            pl.BlockSpec((NPOS_PAD, H), const_map),      # folded pos weight (f32)
            pl.BlockSpec((D_SEM, H), const_map),         # sW1 (bf16)
            pl.BlockSpec((4 * H, H), const_map),         # pW2|sW2|fW1|fW2 (bf16)
            pl.BlockSpec((12, H), const_map),            # packed biases/LN params
        ],
        out_specs=pl.BlockSpec((tile_n, H), row_map),
        compiler_params=pltpu.CompilerParams(
            dimension_semantics=("parallel",),
            vmem_limit_bytes=48 << 20),
        cost_estimate=pl.CostEstimate(
            flops=flops, transcendentals=3 * N, bytes_accessed=bytes_accessed),
    )(sem, pos, W_fold, sW1, w4, vecs)

    return out.reshape(B, R, H)


def init_params(key):
    """Deterministic synthetic parameters matching the module's shapes.

    Fan-in-scaled uniform init (like PyTorch's nn.Linear default) so the
    pre-LayerNorm activations are O(1) and mixed-precision error stays small.
    """
    ks = jax.random.split(key, 16)

    def lin(k, fan_in, shape):
        b = 1.0 / math.sqrt(fan_in)
        return jax.random.uniform(k, shape, jnp.float32, -b, b)

    return {
        # 5 x Linear(1, H): weight (H,1) stored as row (H,), bias (H,)
        "w_proj": lin(ks[0], 1, (N_PROJ, H)),
        "b_proj": lin(ks[1], 1, (N_PROJ, H)),
        # position_ffn
        "pW1": lin(ks[2], N_PROJ * H, (N_PROJ * H, H)),
        "pb1": lin(ks[3], N_PROJ * H, (1, H)),
        "pW2": lin(ks[4], H, (H, H)),
        "pb2": lin(ks[5], H, (1, H)),
        "pg": jnp.ones((1, H), jnp.float32),
        "pbt": jnp.zeros((1, H), jnp.float32),
        # semantic_ffn
        "sW1": lin(ks[6], D_SEM, (D_SEM, H)),
        "sb1": lin(ks[7], D_SEM, (1, H)),
        "sW2": lin(ks[8], H, (H, H)),
        "sb2": lin(ks[9], H, (1, H)),
        "sg": jnp.ones((1, H), jnp.float32),
        "sbt": jnp.zeros((1, H), jnp.float32),
        # ffn
        "fW1": lin(ks[10], H, (H, H)),
        "fb1": lin(ks[11], H, (1, H)),
        "fW2": lin(ks[12], H, (H, H)),
        "fb2": lin(ks[13], H, (1, H)),
        "fg": jnp.ones((1, H), jnp.float32),
        "fbt": jnp.zeros((1, H), jnp.float32),
    }


def reference_forward(sem, pos, p):
    """Pure-JAX f32 reference mirroring the PyTorch eval-mode forward (un-folded)."""
    projs = [pos[..., i:i + 1] * p["w_proj"][i] + p["b_proj"][i] for i in range(N_PROJ)]
    pos_feat = jnp.concatenate(projs, axis=-1)

    def ffn(x, W1, b1, W2, b2, g, bt):
        h = jnp.maximum(x @ W1 + b1, 0.0)
        h = h @ W2 + b2
        return _layer_norm(h, g, bt)

    pos_out = ffn(pos_feat, p["pW1"], p["pb1"], p["pW2"], p["pb2"], p["pg"], p["pbt"])
    sem_out = ffn(sem, p["sW1"], p["sb1"], p["sW2"], p["sb2"], p["sg"], p["sbt"])
    return ffn(sem_out + pos_out, p["fW1"], p["fb1"], p["fW2"], p["fb2"], p["fg"], p["fbt"])


if __name__ == "__main__":
    key = jax.random.PRNGKey(0)
    kp, ks, kpos, ks2, kpos2 = jax.random.split(key, 5)
    params = init_params(kp)

    # small demo shape
    B, R = 2, 8
    semantic_features = jax.random.normal(ks, (B, R, D_SEM), jnp.float32)
    position_features = jax.random.uniform(kpos, (B, R, N_PROJ), jnp.float32)
    out = jax.block_until_ready(
        image_region_embedder(semantic_features, position_features, params))
    ref = reference_forward(semantic_features, position_features, params)
    assert out.shape == (B, R, H)
    # bf16 MXU matmuls (f32 accumulation, f32 LayerNorm) vs pure-f32 reference
    assert jnp.allclose(out, ref, atol=3e-2, rtol=3e-2), "mismatch vs reference (small)"

    # multi-step grid + partial last block: N=300, tile_n=152 -> blocks of 152 + 148
    B2, R2 = 2, 150
    sem2 = jax.random.normal(ks2, (B2, R2, D_SEM), jnp.float32)
    pos2 = jax.random.uniform(kpos2, (B2, R2, N_PROJ), jnp.float32)
    out2 = jax.block_until_ready(image_region_embedder(sem2, pos2, params))
    ref2 = reference_forward(sem2, pos2, params)
    assert out2.shape == (B2, R2, H)
    assert jnp.allclose(out2, ref2, atol=3e-2, rtol=3e-2), "mismatch vs reference (tiled)"

    print("KERNEL_OK")
</pallas_src>

<mosaic_0001>
module attributes {stable_mosaic.version = 11 : i64} {
  func.func @embedder_kernel(%arg0: i32, %arg1: memref<8x2048xf32, #tpu.memory_space<vmem>>, %arg2: memref<8x8xf32, #tpu.memory_space<vmem>>, %arg3: memref<8x128xf32, #tpu.memory_space<vmem>>, %arg4: memref<2048x128xbf16, #tpu.memory_space<vmem>>, %arg5: memref<512x128xbf16, #tpu.memory_space<vmem>>, %arg6: memref<12x128xf32, #tpu.memory_space<vmem>>, %arg7: memref<8x128xf32, #tpu.memory_space<vmem>>) attributes {dimension_semantics = [#tpu.dimension_semantics<parallel>], iteration_bounds = array<i64: 2>, scalar_prefetch = 0 : i64, scratch_operands = 0 : i64, tpu.core_type = #tpu.core_type<tc>, window_params = [{transform_indices = @transform_0, window_bounds = array<i64: 8, 2048>}, {transform_indices = @transform_1, window_bounds = array<i64: 8, 8>}, {pipeline_mode = #tpu.pipeline_mode<synchronous>, transform_indices = @transform_2, window_bounds = array<i64: 8, 128>}, {pipeline_mode = #tpu.pipeline_mode<synchronous>, transform_indices = @transform_3, window_bounds = array<i64: 2048, 128>}, {pipeline_mode = #tpu.pipeline_mode<synchronous>, transform_indices = @transform_4, window_bounds = array<i64: 512, 128>}, {pipeline_mode = #tpu.pipeline_mode<synchronous>, transform_indices = @transform_5, window_bounds = array<i64: 12, 128>}, {transform_indices = @transform_6, window_bounds = array<i64: 8, 128>}]} {
    %c0 = arith.constant 0 : index
    %c0_0 = arith.constant 0 : index
    %0 = vector.load %arg6[%c0, %c0_0] : memref<12x128xf32, #tpu.memory_space<vmem>>, vector<12x128xf32>
    %1 = vector.extract_strided_slice %0 {offsets = [0, 0], sizes = [1, 128], strides = [1, 1]} : vector<12x128xf32> to vector<1x128xf32>
    %2 = vector.extract_strided_slice %0 {offsets = [1, 0], sizes = [1, 128], strides = [1, 1]} : vector<12x128xf32> to vector<1x128xf32>
    %3 = vector.extract_strided_slice %0 {offsets = [2, 0], sizes = [1, 128], strides = [1, 1]} : vector<12x128xf32> to vector<1x128xf32>
    %4 = vector.extract_strided_slice %0 {offsets = [3, 0], sizes = [1, 128], strides = [1, 1]} : vector<12x128xf32> to vector<1x128xf32>
    %5 = vector.extract_strided_slice %0 {offsets = [4, 0], sizes = [1, 128], strides = [1, 1]} : vector<12x128xf32> to vector<1x128xf32>
    %6 = vector.extract_strided_slice %0 {offsets = [5, 0], sizes = [1, 128], strides = [1, 1]} : vector<12x128xf32> to vector<1x128xf32>
    %7 = vector.extract_strided_slice %0 {offsets = [6, 0], sizes = [1, 128], strides = [1, 1]} : vector<12x128xf32> to vector<1x128xf32>
    %8 = vector.extract_strided_slice %0 {offsets = [7, 0], sizes = [1, 128], strides = [1, 1]} : vector<12x128xf32> to vector<1x128xf32>
    %9 = vector.extract_strided_slice %0 {offsets = [8, 0], sizes = [1, 128], strides = [1, 1]} : vector<12x128xf32> to vector<1x128xf32>
    %10 = vector.extract_strided_slice %0 {offsets = [9, 0], sizes = [1, 128], strides = [1, 1]} : vector<12x128xf32> to vector<1x128xf32>
    %11 = vector.extract_strided_slice %0 {offsets = [10, 0], sizes = [1, 128], strides = [1, 1]} : vector<12x128xf32> to vector<1x128xf32>
    %12 = vector.extract_strided_slice %0 {offsets = [11, 0], sizes = [1, 128], strides = [1, 1]} : vector<12x128xf32> to vector<1x128xf32>
    %c0_1 = arith.constant 0 : index
    %c0_2 = arith.constant 0 : index
    %13 = vector.load %arg5[%c0_1, %c0_2] : memref<512x128xbf16, #tpu.memory_space<vmem>>, vector<128x128xbf16>
    %c128 = arith.constant 128 : index
    %c0_3 = arith.constant 0 : index
    %14 = vector.load %arg5[%c128, %c0_3] : memref<512x128xbf16, #tpu.memory_space<vmem>>, vector<128x128xbf16>
    %c256 = arith.constant 256 : index
    %c0_4 = arith.constant 0 : index
    %15 = vector.load %arg5[%c256, %c0_4] : memref<512x128xbf16, #tpu.memory_space<vmem>>, vector<128x128xbf16>
    %c384 = arith.constant 384 : index
    %c0_5 = arith.constant 0 : index
    %16 = vector.load %arg5[%c384, %c0_5] : memref<512x128xbf16, #tpu.memory_space<vmem>>, vector<128x128xbf16>
    %c0_6 = arith.constant 0 : index
    %c0_7 = arith.constant 0 : index
    %17 = vector.load %arg2[%c0_6, %c0_7] : memref<8x8xf32, #tpu.memory_space<vmem>>, vector<8x8xf32>
    %c0_8 = arith.constant 0 : index
    %c0_9 = arith.constant 0 : index
    %18 = vector.load %arg3[%c0_8, %c0_9] : memref<8x128xf32, #tpu.memory_space<vmem>>, vector<8x128xf32>
    %cst = arith.constant dense<0.000000e+00> : vector<8x128xf32>
    %19 = tpu.matmul %17, %18, %cst {dimension_numbers = #tpu.dot_dimension_numbers<[1], [0], [0], [1], [0, 0, 1, 1], [], []>} : vector<8x8xf32>, vector<8x128xf32>, vector<8x128xf32> -> vector<8x128xf32>
    %20 = vector.broadcast %1 : vector<1x128xf32> to vector<8x128xf32>
    %21 = arith.addf %19, %20 : vector<8x128xf32>
    %cst_10 = arith.constant 0.000000e+00 : f32
    %22 = vector.broadcast %cst_10 : f32 to vector<8x128xf32>
    %23 = arith.maximumf %21, %22 : vector<8x128xf32>
    %24 = arith.truncf %23 : vector<8x128xf32> to vector<8x128xbf16>
    %cst_11 = arith.constant dense<0.000000e+00> : vector<8x128xf32>
    %25 = tpu.matmul %24, %13, %cst_11 {dimension_numbers = #tpu.dot_dimension_numbers<[1], [0], [0], [1], [0, 0, 1, 1], [], []>} : vector<8x128xbf16>, vector<128x128xbf16>, vector<8x128xf32> -> vector<8x128xf32>
    %26 = vector.broadcast %2 : vector<1x128xf32> to vector<8x128xf32>
    %27 = arith.addf %25, %26 : vector<8x128xf32>
    %cst_12 = arith.constant dense<0.000000e+00> : vector<8xf32>
    %28 = vector.multi_reduction <add>, %27, %cst_12 [1] : vector<8x128xf32> to vector<8xf32>
    %29 = vector.shape_cast %28 : vector<8xf32> to vector<8x1xf32>
    %cst_13 = arith.constant 1.280000e+02 : f32
    %30 = vector.broadcast %cst_13 : f32 to vector<8x1xf32>
    %31 = arith.divf %29, %30 : vector<8x1xf32>
    %32 = vector.broadcast %31 : vector<8x1xf32> to vector<8x128xf32>
    %33 = arith.subf %27, %32 : vector<8x128xf32>
    %34 = vector.broadcast %31 : vector<8x1xf32> to vector<8x128xf32>
    %35 = arith.subf %27, %34 : vector<8x128xf32>
    %36 = arith.mulf %33, %35 : vector<8x128xf32>
    %cst_14 = arith.constant dense<0.000000e+00> : vector<8xf32>
    %37 = vector.multi_reduction <add>, %36, %cst_14 [1] : vector<8x128xf32> to vector<8xf32>
    %38 = vector.shape_cast %37 : vector<8xf32> to vector<8x1xf32>
    %cst_15 = arith.constant 1.280000e+02 : f32
    %39 = vector.broadcast %cst_15 : f32 to vector<8x1xf32>
    %40 = arith.divf %38, %39 : vector<8x1xf32>
    %41 = vector.broadcast %31 : vector<8x1xf32> to vector<8x128xf32>
    %42 = arith.subf %27, %41 : vector<8x128xf32>
    %cst_16 = arith.constant 9.99999974E-6 : f32
    %43 = vector.broadcast %cst_16 : f32 to vector<8x1xf32>
    %44 = arith.addf %40, %43 : vector<8x1xf32>
    %45 = math.rsqrt %44 : vector<8x1xf32>
    %46 = vector.broadcast %45 : vector<8x1xf32> to vector<8x128xf32>
    %47 = arith.mulf %42, %46 : vector<8x128xf32>
    %48 = vector.broadcast %3 : vector<1x128xf32> to vector<8x128xf32>
    %49 = arith.mulf %47, %48 : vector<8x128xf32>
    %50 = vector.broadcast %4 : vector<1x128xf32> to vector<8x128xf32>
    %51 = arith.addf %49, %50 : vector<8x128xf32>
    %c0_17 = arith.constant 0 : index
    %c0_18 = arith.constant 0 : index
    %52 = vector.load %arg1[%c0_17, %c0_18] : memref<8x2048xf32, #tpu.memory_space<vmem>>, vector<8x2048xf32>
    %53 = arith.truncf %52 : vector<8x2048xf32> to vector<8x2048xbf16>
    %c0_19 = arith.constant 0 : index
    %c0_20 = arith.constant 0 : index
    %54 = vector.load %arg4[%c0_19, %c0_20] : memref<2048x128xbf16, #tpu.memory_space<vmem>>, vector<2048x128xbf16>
    %cst_21 = arith.constant dense<0.000000e+00> : vector<8x128xf32>
    %55 = tpu.matmul %53, %54, %cst_21 {dimension_numbers = #tpu.dot_dimension_numbers<[1], [0], [0], [1], [0, 0, 1, 1], [], []>} : vector<8x2048xbf16>, vector<2048x128xbf16>, vector<8x128xf32> -> vector<8x128xf32>
    %56 = vector.broadcast %5 : vector<1x128xf32> to vector<8x128xf32>
    %57 = arith.addf %55, %56 : vector<8x128xf32>
    %cst_22 = arith.constant 0.000000e+00 : f32
    %58 = vector.broadcast %cst_22 : f32 to vector<8x128xf32>
    %59 = arith.maximumf %57, %58 : vector<8x128xf32>
    %60 = arith.truncf %59 : vector<8x128xf32> to vector<8x128xbf16>
    %cst_23 = arith.constant dense<0.000000e+00> : vector<8x128xf32>
    %61 = tpu.matmul %60, %14, %cst_23 {dimension_numbers = #tpu.dot_dimension_numbers<[1], [0], [0], [1], [0, 0, 1, 1], [], []>} : vector<8x128xbf16>, vector<128x128xbf16>, vector<8x128xf32> -> vector<8x128xf32>
    %62 = vector.broadcast %6 : vector<1x128xf32> to vector<8x128xf32>
    %63 = arith.addf %61, %62 : vector<8x128xf32>
    %cst_24 = arith.constant dense<0.000000e+00> : vector<8xf32>
    %64 = vector.multi_reduction <add>, %63, %cst_24 [1] : vector<8x128xf32> to vector<8xf32>
    %65 = vector.shape_cast %64 : vector<8xf32> to vector<8x1xf32>
    %cst_25 = arith.constant 1.280000e+02 : f32
    %66 = vector.broadcast %cst_25 : f32 to vector<8x1xf32>
    %67 = arith.divf %65, %66 : vector<8x1xf32>
    %68 = vector.broadcast %67 : vector<8x1xf32> to vector<8x128xf32>
    %69 = arith.subf %63, %68 : vector<8x128xf32>
    %70 = vector.broadcast %67 : vector<8x1xf32> to vector<8x128xf32>
    %71 = arith.subf %63, %70 : vector<8x128xf32>
    %72 = arith.mulf %69, %71 : vector<8x128xf32>
    %cst_26 = arith.constant dense<0.000000e+00> : vector<8xf32>
    %73 = vector.multi_reduction <add>, %72, %cst_26 [1] : vector<8x128xf32> to vector<8xf32>
    %74 = vector.shape_cast %73 : vector<8xf32> to vector<8x1xf32>
    %cst_27 = arith.constant 1.280000e+02 : f32
    %75 = vector.broadcast %cst_27 : f32 to vector<8x1xf32>
    %76 = arith.divf %74, %75 : vector<8x1xf32>
    %77 = vector.broadcast %67 : vector<8x1xf32> to vector<8x128xf32>
    %78 = arith.subf %63, %77 : vector<8x128xf32>
    %cst_28 = arith.constant 9.99999974E-6 : f32
    %79 = vector.broadcast %cst_28 : f32 to vector<8x1xf32>
    %80 = arith.addf %76, %79 : vector<8x1xf32>
    %81 = math.rsqrt %80 : vector<8x1xf32>
    %82 = vector.broadcast %81 : vector<8x1xf32> to vector<8x128xf32>
    %83 = arith.mulf %78, %82 : vector<8x128xf32>
    %84 = vector.broadcast %7 : vector<1x128xf32> to vector<8x128xf32>
    %85 = arith.mulf %83, %84 : vector<8x128xf32>
    %86 = vector.broadcast %8 : vector<1x128xf32> to vector<8x128xf32>
    %87 = arith.addf %85, %86 : vector<8x128xf32>
    %88 = arith.addf %87, %51 : vector<8x128xf32>
    %89 = arith.truncf %88 : vector<8x128xf32> to vector<8x128xbf16>
    %cst_29 = arith.constant dense<0.000000e+00> : vector<8x128xf32>
    %90 = tpu.matmul %89, %15, %cst_29 {dimension_numbers = #tpu.dot_dimension_numbers<[1], [0], [0], [1], [0, 0, 1, 1], [], []>} : vector<8x128xbf16>, vector<128x128xbf16>, vector<8x128xf32> -> vector<8x128xf32>
    %91 = vector.broadcast %9 : vector<1x128xf32> to vector<8x128xf32>
    %92 = arith.addf %90, %91 : vector<8x128xf32>
    %cst_30 = arith.constant 0.000000e+00 : f32
    %93 = vector.broadcast %cst_30 : f32 to vector<8x128xf32>
    %94 = arith.maximumf %92, %93 : vector<8x128xf32>
    %95 = arith.truncf %94 : vector<8x128xf32> to vector<8x128xbf16>
    %cst_31 = arith.constant dense<0.000000e+00> : vector<8x128xf32>
    %96 = tpu.matmul %95, %16, %cst_31 {dimension_numbers = #tpu.dot_dimension_numbers<[1], [0], [0], [1], [0, 0, 1, 1], [], []>} : vector<8x128xbf16>, vector<128x128xbf16>, vector<8x128xf32> -> vector<8x128xf32>
    %97 = vector.broadcast %10 : vector<1x128xf32> to vector<8x128xf32>
    %98 = arith.addf %96, %97 : vector<8x128xf32>
    %cst_32 = arith.constant dense<0.000000e+00> : vector<8xf32>
    %99 = vector.multi_reduction <add>, %98, %cst_32 [1] : vector<8x128xf32> to vector<8xf32>
    %100 = vector.shape_cast %99 : vector<8xf32> to vector<8x1xf32>
    %cst_33 = arith.constant 1.280000e+02 : f32
    %101 = vector.broadcast %cst_33 : f32 to vector<8x1xf32>
    %102 = arith.divf %100, %101 : vector<8x1xf32>
    %103 = vector.broadcast %102 : vector<8x1xf32> to vector<8x128xf32>
    %104 = arith.subf %98, %103 : vector<8x128xf32>
    %105 = vector.broadcast %102 : vector<8x1xf32> to vector<8x128xf32>
    %106 = arith.subf %98, %105 : vector<8x128xf32>
    %107 = arith.mulf %104, %106 : vector<8x128xf32>
    %cst_34 = arith.constant dense<0.000000e+00> : vector<8xf32>
    %108 = vector.multi_reduction <add>, %107, %cst_34 [1] : vector<8x128xf32> to vector<8xf32>
    %109 = vector.shape_cast %108 : vector<8xf32> to vector<8x1xf32>
    %cst_35 = arith.constant 1.280000e+02 : f32
    %110 = vector.broadcast %cst_35 : f32 to vector<8x1xf32>
    %111 = arith.divf %109, %110 : vector<8x1xf32>
    %112 = vector.broadcast %102 : vector<8x1xf32> to vector<8x128xf32>
    %113 = arith.subf %98, %112 : vector<8x128xf32>
    %cst_36 = arith.constant 9.99999974E-6 : f32
    %114 = vector.broadcast %cst_36 : f32 to vector<8x1xf32>
    %115 = arith.addf %111, %114 : vector<8x1xf32>
    %116 = math.rsqrt %115 : vector<8x1xf32>
    %117 = vector.broadcast %116 : vector<8x1xf32> to vector<8x128xf32>
    %118 = arith.mulf %113, %117 : vector<8x128xf32>
    %119 = vector.broadcast %11 : vector<1x128xf32> to vector<8x128xf32>
    %120 = arith.mulf %118, %119 : vector<8x128xf32>
    %121 = vector.broadcast %12 : vector<1x128xf32> to vector<8x128xf32>
    %122 = arith.addf %120, %121 : vector<8x128xf32>
    %c0_37 = arith.constant 0 : index
    %c0_38 = arith.constant 0 : index
    %123 = vector.load %arg7[%c0_37, %c0_38] : memref<8x128xf32, #tpu.memory_space<vmem>>, vector<8x128xf32>
    tpu.vector_store %arg7[%c0_37, %c0_38], %122 {strides = array<i32>} : memref<8x128xf32, #tpu.memory_space<vmem>>, vector<8x128xf32>,
    return
  }
  func.func @transform_0(%arg0: i32) -> (i32, i32) {
    %c0_i32 = arith.constant 0 : i32
    %c0_i32_0 = arith.constant 0 : i32
    return %arg0, %c0_i32 : i32, i32
  }
  func.func @transform_1(%arg0: i32) -> (i32, i32) {
    %c0_i32 = arith.constant 0 : i32
    %c0_i32_0 = arith.constant 0 : i32
    return %arg0, %c0_i32 : i32, i32
  }
  func.func @transform_2(%arg0: i32) -> (i32, i32) {
    %c0_i32 = arith.constant 0 : i32
    %c0_i32_0 = arith.constant 0 : i32
    %c0_i32_1 = arith.constant 0 : i32
    return %c0_i32, %c0_i32_0 : i32, i32
  }
  func.func @transform_3(%arg0: i32) -> (i32, i32) {
    %c0_i32 = arith.constant 0 : i32
    %c0_i32_0 = arith.constant 0 : i32
    %c0_i32_1 = arith.constant 0 : i32
    return %c0_i32, %c0_i32_0 : i32, i32
  }
  func.func @transform_4(%arg0: i32) -> (i32, i32) {
    %c0_i32 = arith.constant 0 : i32
    %c0_i32_0 = arith.constant 0 : i32
    %c0_i32_1 = arith.constant 0 : i32
    return %c0_i32, %c0_i32_0 : i32, i32
  }
  func.func @transform_5(%arg0: i32) -> (i32, i32) {
    %c0_i32 = arith.constant 0 : i32
    %c0_i32_0 = arith.constant 0 : i32
    %c0_i32_1 = arith.constant 0 : i32
    return %c0_i32, %c0_i32_0 : i32, i32
  }
  func.func @transform_6(%arg0: i32) -> (i32, i32) {
    %c0_i32 = arith.constant 0 : i32
    %c0_i32_0 = arith.constant 0 : i32
    return %arg0, %c0_i32 : i32, i32
  }
}

</mosaic_0001>

<llo_original>
// kernel: image_region_embedder.1
$region0: #{image_region_embedder.1}
  #allocation0 [shape = 'u32[]', space=smem, size = 0x4, offset = 0x4, fixed_abs, tag = 'smem constant byte address 0x4 - core index']
  #allocation1 [shape = 'u32[144,128]{1,0:T(1,128)}', space=vmem, size = 0x12000, scoped, tag = 'internal scratch']
  %s0 = inlined_call_operand.vmem [shape: f32[16,2048], index: 0, kind: input, shape index: {}]
  %s1 = inlined_call_operand.vmem [shape: f32[16,8], index: 1, kind: input, shape index: {}]
  %s2 = inlined_call_operand.vmem [shape: f32[8,128], index: 2, kind: input, shape index: {}]
  %s3 = inlined_call_operand.vmem [shape: bf16[2048,128], index: 3, kind: input, shape index: {}]
  %s4 = inlined_call_operand.vmem [shape: bf16[512,128], index: 4, kind: input, shape index: {}]
  %s5 = inlined_call_operand.vmem [shape: f32[12,128], index: 5, kind: input, shape index: {}]
  %s6 = inlined_call_operand.hbm [shape: f32[16,128], index: 6, kind: output, shape index: {}]
  %s7 = sld [smem:[#allocation0]]
  $region57: #{image_region_embedder.1} parent=0
    _
  %s9 = ssub.s32 1, %s7
  %s10 = scalar_select 0, %s9, %s7
  $region1: #{image_region_embedder.1} parent=0
    #allocation2 [shape = 'u8[8192]{0}', space=vmem, size = 0x2000, scoped, tag = 'output window, operand 0']
    #allocation3 [shape = 's32[2]{0}', space=sflag, size = 0x8, scoped, tag = 'scoped memory for image_region_embedder.1']
    %11 = vsyncpa [#allocation3], 0
    %s12 = scalar_lea.sflag [#allocation3], 1
    %13 = vsyncpa %s12, 0
    loop: start=0, step=1, limit=4
    $region2: #{image_region_embedder.1} parent=1 // loop_pre_header
      _
    $region3: #{image_region_embedder.1} parent=1 // loop_header
      %s15 = sphi 0, %s19
      %p16 = scmp.ge.s32.totalorder %s15, 4
      %s25 = sphi 0, %s27
      %s28 = sphi 0, %s25
      %s29 = sphi 0, %s28
      %s45 = sphi 0, %s29
      %s51 = sphi 0, %s53
      %s54 = sphi 0, %s51
      %s55 = sphi 0, %s54
      %s71 = sphi 0, %s55
      %s75 = sphi 0, %s75
      %s77 = sphi 0, %s75
      %s78 = sphi 0, %s77
      %s92 = sphi 0, %s78
      %s96 = sphi 0, %s96
      %s98 = sphi 0, %s96
      %s99 = sphi 0, %s98
      %s113 = sphi 0, %s99
      %s117 = sphi 0, %s117
      %s119 = sphi 0, %s117
      %s120 = sphi 0, %s119
      %s134 = sphi 0, %s120
      %s138 = sphi 0, %s138
      %s140 = sphi 0, %s138
      %s141 = sphi 0, %s140
      %s155 = sphi 0, %s141
      %s161 = sphi 0, %s163
      %s164 = sphi 0, %s161
      %s165 = sphi 0, %s164
      %s181 = sphi 0, %s165
    $region4: #{image_region_embedder.1} parent=1 // loop_header_branch
      %18 = sbr.rel (%p16) target = $region8
    $region5: #{image_region_embedder.1} parent=1 // loop_body
      %s20 = ssub.s32 %s15, 1
      %s21 = ssub.s32 %s15, 2
      %s22 = sadd.s32 %s15, 1
      %s23 = ssub.s32 %s15, %s22
      %p24 = scmp.eq.s32.totalorder %s23, 0
      %s26 = sadd.s32 %s25, 1
      %s27 = scalar_select %p24, %s25, %s26
      %p30 = pneg %p24
      %p31 = scmp.eq.s32.totalorder %s15, 1
      %p32 = por %p30, %p31
      %p33 = scmp.ne.s32.totalorder %s25, %s28
      %p34 = scmp.eq.s32.totalorder %s15, 0
      %p35 = por %p33, %p34
      %p36 = scmp.ne.s32.totalorder %s25, %s28
      %p37 = scmp.eq.s32.totalorder %s20, 1
      %p38 = por %p36, %p37
      %p39 = scmp.ne.s32.totalorder %s28, %s29
      %p40 = scmp.eq.s32.totalorder %s20, 0
      %p41 = por %p39, %p40
      %p42 = scmp.ne.s32.totalorder %s28, %s29
      %p43 = scmp.eq.s32.totalorder %s21, 1
      %p44 = por %p42, %p43
      %p46 = scmp.ne.s32.totalorder %s29, %s45
      %p47 = scmp.eq.s32.totalorder %s21, 0
      %p48 = por %p46, %p47
      %s49 = ssub.s32 %s15, %s22
      %p50 = scmp.eq.s32.totalorder %s49, 0
      %s52 = sadd.s32 %s51, 1
      %s53 = scalar_select %p50, %s51, %s52
      %p56 = pneg %p50
      %p57 = scmp.eq.s32.totalorder %s15, 1
      %p58 = por %p56, %p57
      %p59 = scmp.ne.s32.totalorder %s51, %s54
      %p60 = scmp.eq.s32.totalorder %s15, 0
      %p61 = por %p59, %p60
      %p62 = scmp.ne.s32.totalorder %s51, %s54
      %p63 = scmp.eq.s32.totalorder %s20, 1
      %p64 = por %p62, %p63
      %p65 = scmp.ne.s32.totalorder %s54, %s55
      %p66 = scmp.eq.s32.totalorder %s20, 0
      %p67 = por %p65, %p66
      %p68 = scmp.ne.s32.totalorder %s54, %s55
      %p69 = scmp.eq.s32.totalorder %s21, 1
      %p70 = por %p68, %p69
      %p72 = scmp.ne.s32.totalorder %s55, %s71
      %p73 = scmp.eq.s32.totalorder %s21, 0
      %p74 = por %p72, %p73
      %s76 = sadd.s32 %s75, 1
      %p79 = scmp.eq.s32.totalorder %s15, 1
      %p80 = scmp.ne.s32.totalorder %s75, %s77
      %p81 = scmp.eq.s32.totalorder %s15, 0
      %p82 = por %p80, %p81
      %p83 = scmp.ne.s32.totalorder %s75, %s77
      %p84 = scmp.eq.s32.totalorder %s20, 1
      %p85 = por %p83, %p84
      %p86 = scmp.ne.s32.totalorder %s77, %s78
      %p87 = scmp.eq.s32.totalorder %s20, 0
      %p88 = por %p86, %p87
      %p89 = scmp.ne.s32.totalorder %s77, %s78
      %p90 = scmp.eq.s32.totalorder %s21, 1
      %p91 = por %p89, %p90
      %p93 = scmp.ne.s32.totalorder %s78, %s92
      %p94 = scmp.eq.s32.totalorder %s21, 0
      %p95 = por %p93, %p94
      %s97 = sadd.s32 %s96, 1
      %p100 = scmp.eq.s32.totalorder %s15, 1
      %p101 = scmp.ne.s32.totalorder %s96, %s98
      %p102 = scmp.eq.s32.totalorder %s15, 0
      %p103 = por %p101, %p102
      %p104 = scmp.ne.s32.totalorder %s96, %s98
      %p105 = scmp.eq.s32.totalorder %s20, 1
      %p106 = por %p104, %p105
      %p107 = scmp.ne.s32.totalorder %s98, %s99
      %p108 = scmp.eq.s32.totalorder %s20, 0
      %p109 = por %p107, %p108
      %p110 = scmp.ne.s32.totalorder %s98, %s99
      %p111 = scmp.eq.s32.totalorder %s21, 1
      %p112 = por %p110, %p111
      %p114 = scmp.ne.s32.totalorder %s99, %s113
      %p115 = scmp.eq.s32.totalorder %s21, 0
      %p116 = por %p114, %p115
      %s118 = sadd.s32 %s117, 1
      %p121 = scmp.eq.s32.totalorder %s15, 1
      %p122 = scmp.ne.s32.totalorder %s117, %s119
      %p123 = scmp.eq.s32.totalorder %s15, 0
      %p124 = por %p122, %p123
      %p125 = scmp.ne.s32.totalorder %s117, %s119
      %p126 = scmp.eq.s32.totalorder %s20, 1
      %p127 = por %p125, %p126
      %p128 = scmp.ne.s32.totalorder %s119, %s120
      %p129 = scmp.eq.s32.totalorder %s20, 0
      %p130 = por %p128, %p129
      %p131 = scmp.ne.s32.totalorder %s119, %s120
      %p132 = scmp.eq.s32.totalorder %s21, 1
      %p133 = por %p131, %p132
      %p135 = scmp.ne.s32.totalorder %s120, %s134
      %p136 = scmp.eq.s32.totalorder %s21, 0
      %p137 = por %p135, %p136
      %s139 = sadd.s32 %s138, 1
      %p142 = scmp.eq.s32.totalorder %s15, 1
      %p143 = scmp.ne.s32.totalorder %s138, %s140
      %p144 = scmp.eq.s32.totalorder %s15, 0
      %p145 = por %p143, %p144
      %p146 = scmp.ne.s32.totalorder %s138, %s140
      %p147 = scmp.eq.s32.totalorder %s20, 1
      %p148 = por %p146, %p147
      %p149 = scmp.ne.s32.totalorder %s140, %s141
      %p150 = scmp.eq.s32.totalorder %s20, 0
      %p151 = por %p149, %p150
      %p152 = scmp.ne.s32.totalorder %s140, %s141
      %p153 = scmp.eq.s32.totalorder %s21, 1
      %p154 = por %p152, %p153
      %p156 = scmp.ne.s32.totalorder %s141, %s155
      %p157 = scmp.eq.s32.totalorder %s21, 0
      %p158 = por %p156, %p157
      %s159 = ssub.s32 %s15, %s22
      %p160 = scmp.eq.s32.totalorder %s159, 0
      %s162 = sadd.s32 %s161, 1
      %s163 = scalar_select %p160, %s161, %s162
      %p166 = pneg %p160
      %p167 = scmp.eq.s32.totalorder %s15, 1
      %p168 = por %p166, %p167
      %p169 = scmp.ne.s32.totalorder %s161, %s164
      %p170 = scmp.eq.s32.totalorder %s15, 0
      %p171 = por %p169, %p170
      %p172 = scmp.ne.s32.totalorder %s161, %s164
      %p173 = scmp.eq.s32.totalorder %s20, 1
      %p174 = por %p172, %p173
      %p175 = scmp.ne.s32.totalorder %s164, %s165
      %p176 = scmp.eq.s32.totalorder %s20, 0
      %p177 = por %p175, %p176
      %p178 = scmp.ne.s32.totalorder %s164, %s165
      %p179 = scmp.eq.s32.totalorder %s21, 1
      %p180 = por %p178, %p179
      %p182 = scmp.ne.s32.totalorder %s165, %s181
      %p183 = scmp.eq.s32.totalorder %s21, 0
      %p184 = por %p182, %p183
      %p185 = scmp.le.s32.totalorder 1, %s15
      %p186 = scmp.lt.s32.totalorder %s15, 3
      %p187 = pnand %p185, %p186
      %p188 = pneg %p187
      // Predicated region
      $region9: #{image_region_embedder.1} parent=5 // pred_check
        _
      $region10: #{image_region_embedder.1} parent=5 // pred_check_branch
        %190 = sbr.rel (%p187) target = $region12
      $region11: #{image_region_embedder.1} parent=5 // pred_region
        %s191 = ssub.s32 %s15, 1
        // Predicated region
        $region13: #{image_region_embedder.1} parent=11 // pred_check
          %p192 = pneg %p88
        $region14: #{image_region_embedder.1} parent=11 // pred_check_branch
          %194 = sbr.rel (%p192) target = $region16
        $region15: #{image_region_embedder.1} parent=11 // pred_region
          _
        $region16: #{image_region_embedder.1} parent=11 // pred_fallthru
          _
        // Predicated region
        $region17: #{image_region_embedder.1} parent=11 // pred_check
          %p195 = pneg %p109
        $region18: #{image_region_embedder.1} parent=11 // pred_check_branch
          %197 = sbr.rel (%p195) target = $region20
        $region19: #{image_region_embedder.1} parent=11 // pred_region
          _
        $region20: #{image_region_embedder.1} parent=11 // pred_fallthru
          _
        // Predicated region
        $region21: #{image_region_embedder.1} parent=11 // pred_check
          %p198 = pneg %p130
        $region22: #{image_region_embedder.1} parent=11 // pred_check_branch
          %200 = sbr.rel (%p198) target = $region24
        $region23: #{image_region_embedder.1} parent=11 // pred_region
          _
        $region24: #{image_region_embedder.1} parent=11 // pred_fallthru
          _
        // Predicated region
        $region25: #{image_region_embedder.1} parent=11 // pred_check
          %p201 = pneg %p151
        $region26: #{image_region_embedder.1} parent=11 // pred_check_branch
          %203 = sbr.rel (%p201) target = $region28
        $region27: #{image_region_embedder.1} parent=11 // pred_region
          _
        $region28: #{image_region_embedder.1} parent=11 // pred_fallthru
          _
      $region12: #{image_region_embedder.1} parent=5 // pred_fallthru
        _
      %p204 = scmp.lt.s32.totalorder %s15, 2
      // Predicated region
      $region29: #{image_region_embedder.1} parent=5 // pred_check
        %p205 = pneg %p204
      $region30: #{image_region_embedder.1} parent=5 // pred_check_branch
        %207 = sbr.rel (%p205) target = $region32
      $region31: #{image_region_embedder.1} parent=5 // pred_region
        // Predicated region
        $region33: #{image_region_embedder.1} parent=31 // pred_check
          %p208 = pneg %p35
        $region34: #{image_region_embedder.1} parent=31 // pred_check_branch
          %210 = sbr.rel (%p208) target = $region36
        $region35: #{image_region_embedder.1} parent=31 // pred_region
          %p211 = scmp.lt.s32.totalorder %s15, 1
          %s212 = scalar_select %p211, %s15, 1
          %s213 = smul.addr %s212, 16
          %s214 = smul.addr %s213, 8
          %s215 = scalar_lea.vmem %s0, %s214
        $region36: #{image_region_embedder.1} parent=31 // pred_fallthru
          _
        // Predicated region
        $region37: #{image_region_embedder.1} parent=31 // pred_check
          %p216 = pneg %p61
        $region38: #{image_region_embedder.1} parent=31 // pred_check_branch
          %218 = sbr.rel (%p216) target = $region40
        $region39: #{image_region_embedder.1} parent=31 // pred_region
          %p219 = scmp.lt.s32.totalorder %s15, 1
          %s220 = scalar_select %p219, %s15, 1
          %s221 = smul.addr %s220, 8
          %s222 = scalar_lea.vmem %s1, %s221
        $region40: #{image_region_embedder.1} parent=31 // pred_fallthru
          _
      $region32: #{image_region_embedder.1} parent=5 // pred_fallthru
        _
      %p223 = scmp.le.s32.totalorder 1, %s15
      %p224 = scmp.lt.s32.totalorder %s15, 3
      %p225 = pnand %p223, %p224
      %p226 = pneg %p225
      // Predicated region
      $region41: #{image_region_embedder.1} parent=5 // pred_check
        _
      $region42: #{image_region_embedder.1} parent=5 // pred_check_branch
        %228 = sbr.rel (%p225) target = $region44
      $region43: #{image_region_embedder.1} parent=5 // pred_region
        %s229 = ssub.s32 %s15, 1
        %p230 = scmp.lt.s32.totalorder %s20, 1
        %s231 = scalar_select %p230, %s20, 1
        %s232 = smul.addr %s231, 16
        %s233 = smul.addr %s232, 8
        %s234 = scalar_lea.vmem %s0, %s233
        %p235 = pneg %p41
        %p236 = pneg %p38
        %p237 = scmp.lt.s32.totalorder %s20, 1
        %s238 = scalar_select %p237, %s20, 1
        %s239 = smul.addr %s238, 8
        %s240 = scalar_lea.vmem %s1, %s239
        %p241 = pneg %p67
        %p242 = pneg %p64
        %p243 = pneg %p88
        %p244 = pneg %p85
        %p245 = pneg %p109
        %p246 = pneg %p106
        %p247 = pneg %p130
        %p248 = pneg %p127
        %p249 = pneg %p151
        %p250 = pneg %p148
        %p251 = pneg %p177
        %p252 = pneg %p174
        %s253 = sand.u32 %s164, 1
        %s254 = scalar_lea.sflag [#allocation3], %s253
        %s255 = sand.u32 %s164, 1
        %s256 = smul.addr %s255, 8
        %s257 = scalar_lea.vmem [#allocation2], %s256
        %p258 = scmp.lt.s32.totalorder %s20, 1
        %s259 = scalar_select %p258, %s20, 1
        %s260 = smul.addr %s259, 16
        %s261 = smul.addr %s260, 8
        %s262 = scalar_lea.vmem %s0, %s261
        %p263 = scmp.lt.s32.totalorder %s20, 1
        %s264 = scalar_select %p263, %s20, 1
        %s265 = smul.addr %s264, 8
        %s266 = scalar_lea.vmem %s1, %s265
        %v268 = vld [vmem:[%s5] sm:$0xff]
        %v269 = vld [vmem:[%s5 + $0x8] sm:$0xf]
        %v270 = vld [vmem:[%s4] sm:$0xf]
        %v271 = vld [vmem:[%s4 + $0x4] sm:$0xf]
        %v272 = vld [vmem:[%s4 + $0x8] sm:$0xf]
        %v273 = vld [vmem:[%s4 + $0xc] sm:$0xf]
        %v274 = vld [vmem:[%s4 + $0x10] sm:$0xf]
        %v275 = vld [vmem:[%s4 + $0x14] sm:$0xf]
        %v276 = vld [vmem:[%s4 + $0x18] sm:$0xf]
        %v277 = vld [vmem:[%s4 + $0x1c] sm:$0xf]
        %v278 = vld [vmem:[%s4 + $0x20] sm:$0xf]
        %v279 = vld [vmem:[%s4 + $0x24] sm:$0xf]
        %v280 = vld [vmem:[%s4 + $0x28] sm:$0xf]
        %v281 = vld [vmem:[%s4 + $0x2c] sm:$0xf]
        %v282 = vld [vmem:[%s4 + $0x30] sm:$0xf]
        %v283 = vld [vmem:[%s4 + $0x34] sm:$0xf]
        %v284 = vld [vmem:[%s4 + $0x38] sm:$0xf]
        %v285 = vld [vmem:[%s4 + $0x3c] sm:$0xf]
        %v286 = vld [vmem:[%s4 + $0x40] sm:$0xf]
        %v287 = vld [vmem:[%s4 + $0x44] sm:$0xf]
        %v288 = vld [vmem:[%s4 + $0x48] sm:$0xf]
        %v289 = vld [vmem:[%s4 + $0x4c] sm:$0xf]
        %v290 = vld [vmem:[%s4 + $0x50] sm:$0xf]
        %v291 = vld [vmem:[%s4 + $0x54] sm:$0xf]
        %v292 = vld [vmem:[%s4 + $0x58] sm:$0xf]
        %v293 = vld [vmem:[%s4 + $0x5c] sm:$0xf]
        %v294 = vld [vmem:[%s4 + $0x60] sm:$0xf]
        %v295 = vld [vmem:[%s4 + $0x64] sm:$0xf]
        %v296 = vld [vmem:[%s4 + $0x68] sm:$0xf]
        %v297 = vld [vmem:[%s4 + $0x6c] sm:$0xf]
        %v298 = vld [vmem:[%s4 + $0x70] sm:$0xf]
        %v299 = vld [vmem:[%s4 + $0x74] sm:$0xf]
        %v300 = vld [vmem:[%s4 + $0x78] sm:$0xf]
        %v301 = vld [vmem:[%s4 + $0x7c] sm:$0xf]
        %v302 = vld [vmem:[%s4 + $0x80] sm:$0xf]
        %v303 = vld [vmem:[%s4 + $0x84] sm:$0xf]
        %v304 = vld [vmem:[%s4 + $0x88] sm:$0xf]
        %v305 = vld [vmem:[%s4 + $0x8c] sm:$0xf]
        %v306 = vld [vmem:[%s4 + $0x90] sm:$0xf]
        %v307 = vld [vmem:[%s4 + $0x94] sm:$0xf]
        %v308 = vld [vmem:[%s4 + $0x98] sm:$0xf]
        %v309 = vld [vmem:[%s4 + $0x9c] sm:$0xf]
        %v310 = vld [vmem:[%s4 + $0xa0] sm:$0xf]
        %v311 = vld [vmem:[%s4 + $0xa4] sm:$0xf]
        %v312 = vld [vmem:[%s4 + $0xa8] sm:$0xf]
        %v313 = vld [vmem:[%s4 + $0xac] sm:$0xf]
        %v314 = vld [vmem:[%s4 + $0xb0] sm:$0xf]
        %v315 = vld [vmem:[%s4 + $0xb4] sm:$0xf]
        %v316 = vld [vmem:[%s4 + $0xb8] sm:$0xf]
        %v317 = vld [vmem:[%s4 + $0xbc] sm:$0xf]
        %v318 = vld [vmem:[%s4 + $0xc0] sm:$0xf]
        %v319 = vld [vmem:[%s4 + $0xc4] sm:$0xf]
        %v320 = vld [vmem:[%s4 + $0xc8] sm:$0xf]
        %v321 = vld [vmem:[%s4 + $0xcc] sm:$0xf]
        %v322 = vld [vmem:[%s4 + $0xd0] sm:$0xf]
        %v323 = vld [vmem:[%s4 + $0xd4] sm:$0xf]
        %v324 = vld [vmem:[%s4 + $0xd8] sm:$0xf]
        %v325 = vld [vmem:[%s4 + $0xdc] sm:$0xf]
        %v326 = vld [vmem:[%s4 + $0xe0] sm:$0xf]
        %v327 = vld [vmem:[%s4 + $0xe4] sm:$0xf]
        %v328 = vld [vmem:[%s4 + $0xe8] sm:$0xf]
        %v329 = vld [vmem:[%s4 + $0xec] sm:$0xf]
        %v330 = vld [vmem:[%s4 + $0xf0] sm:$0xf]
        %v331 = vld [vmem:[%s4 + $0xf4] sm:$0xf]
        %v332 = vld [vmem:[%s4 + $0xf8] sm:$0xf]
        %v333 = vld [vmem:[%s4 + $0xfc] sm:$0xf]
        %v334 = vld [vmem:[%s266] sm:$0xff]
        %v335 = vld [vmem:[%s2] sm:$0xff]
        %v336 = vlaneseq
        %v337 = vshrl.u32 %v336, 7
        %v338 = vsub.s32 0, %v337
        %v339 = vrot.slane %v268, %v338
        %vm340 = vcmask 64512
        %v342 = vsel %vm340, %v334, 0
        %344 = vmatprep.subr.mxu0 0.0
        %345 = vmatpush1.msra.mxu0 0.0
        %346 = vmatprep.subr.mxu0 0.0
        %347 = vmatpush1.msra.mxu0 0.0
        %348 = vmatprep.subr.mxu0 0.0
        %349 = vmatpush1.msra.mxu0 0.0
        %350 = vmatprep.subr.mxu0 0.0
        %351 = vmatpush1.msra.mxu0 0.0
        %352 = vmatprep.subr.mxu0 0.0
        %353 = vmatpush1.msra.mxu0 0.0
        %354 = vmatprep.subr.mxu0 0.0
        %355 = vmatpush1.msra.mxu0 0.0
        %356 = vmatprep.subr.mxu0 0.0
        %357 = vmatpush1.msra.mxu0 0.0
        %358 = vmatprep.subr.mxu0 0.0
        %359 = vmatpush1.msra.mxu0 0.0
        %360 = vmatprep.subr.mxu0 0.0
        %361 = vmatpush1.msra.mxu0 0.0
        %362 = vmatprep.subr.mxu0 0.0
        %363 = vmatpush1.msra.mxu0 0.0
        %364 = vmatprep.subr.mxu0 0.0
        %365 = vmatpush1.msra.mxu0 0.0
        %366 = vmatprep.subr.mxu0 0.0
        %367 = vmatpush1.msra.mxu0 0.0
        %368 = vmatprep.subr.mxu0 0.0
        %369 = vmatpush1.msra.mxu0 0.0
        %370 = vmatprep.subr.mxu0 0.0
        %371 = vmatpush1.msra.mxu0 0.0
        %372 = vmatprep.subr.mxu0 0.0
        %373 = vmatpush1.msra.mxu0 0.0
        %374 = vmatprep.subr.mxu0 0.0
        %375 = vmatpush1.msra.mxu0 %v335
        %376 = vmatprep.subr.mxu0 0.0
        %377 = vmatpush2.msra.mxu0 0.0
        %378 = vmatprep.subr.mxu0 0.0
        %379 = vmatpush2.msra.mxu0 0.0
        %380 = vmatprep.subr.mxu0 0.0
        %381 = vmatpush2.msra.mxu0 0.0
        %382 = vmatprep.subr.mxu0 0.0
        %383 = vmatpush2.msra.mxu0 0.0
        %384 = vmatprep.subr.mxu0 0.0
        %385 = vmatpush2.msra.mxu0 0.0
        %386 = vmatprep.subr.mxu0 0.0
        %387 = vmatpush2.msra.mxu0 0.0
        %388 = vmatprep.subr.mxu0 0.0
        %389 = vmatpush2.msra.mxu0 0.0
        %390 = vmatprep.subr.mxu0 0.0
        %391 = vmatpush2.msra.mxu0 0.0
        %392 = vmatprep.subr.mxu0 0.0
        %393 = vmatpush2.msra.mxu0 0.0
        %394 = vmatprep.subr.mxu0 0.0
        %395 = vmatpush2.msra.mxu0 0.0
        %396 = vmatprep.subr.mxu0 0.0
        %397 = vmatpush2.msra.mxu0 0.0
        %398 = vmatprep.subr.mxu0 0.0
        %399 = vmatpush2.msra.mxu0 0.0
        %400 = vmatprep.subr.mxu0 0.0
        %401 = vmatpush2.msra.mxu0 0.0
        %402 = vmatprep.subr.mxu0 0.0
        %403 = vmatpush2.msra.mxu0 0.0
        %404 = vmatprep.subr.mxu0 0.0
        %405 = vmatpush2.msra.mxu0 0.0
        %406 = vmatprep.subr.mxu0 0.0
        %407 = vmatpush2.msra.mxu0 0.0
        %408 = vmatprep.mubr.f32.mxu0 0.0
        %409 = vmatmul.mubr.f32.gmra.mxu0 %v342
        %v410 = vpop.f32.mrf.mxu0
        %v411 = vadd.f32 %v339, %v410
        %v412 = vpop.f32.mrf.mxu0
        %413 = vdwg.mxu0
        %v414 = vmax.f32 %v411, 0.0
        %v415 = vpack.c.bf16 %v414, %v414
        %v416 = vlaneseq
        %v417 = vshrl.u32 %v416, 7
        %v418 = vsub.s32 1, %v417
        %v419 = vrot.slane %v268, %v418
        %v436 = vunpack.c.l.b16 %v270
        %v437 = vunpack.c.l.b16 %v271
        %v438 = vunpack.c.l.b16 %v272
        %v439 = vunpack.c.l.b16 %v273
        %v440 = vunpack.c.l.b16 %v274
        %v441 = vunpack.c.l.b16 %v275
        %v442 = vunpack.c.l.b16 %v276
        %v443 = vunpack.c.l.b16 %v277
        %v444 = vunpack.c.l.b16 %v278
        %v445 = vunpack.c.l.b16 %v279
        %v446 = vunpack.c.l.b16 %v280
        %v447 = vunpack.c.l.b16 %v281
        %v448 = vunpack.c.l.b16 %v282
        %v449 = vunpack.c.l.b16 %v283
        %v450 = vunpack.c.l.b16 %v284
        %v451 = vunpack.c.l.b16 %v285
        %v452 = vpack.c.b16 %v437, %v436
        %v453 = vpack.c.b16 %v439, %v438
        %v454 = vpack.c.b16 %v441, %v440
        %v455 = vpack.c.b16 %v443, %v442
        %v456 = vpack.c.b16 %v445, %v444
        %v457 = vpack.c.b16 %v447, %v446
        %v458 = vpack.c.b16 %v449, %v448
        %v459 = vpack.c.b16 %v451, %v450
        %468 = vmatprep.subr.bf16.mxu0 0
        %469 = vmatpush1.bf16.msra.mxu0 %v459
        %470 = vmatprep.subr.bf16.mxu0 0
        %471 = vmatpush1.bf16.msra.mxu0 %v458
        %472 = vmatprep.subr.bf16.mxu0 0
        %473 = vmatpush1.bf16.msra.mxu0 %v457
        %474 = vmatprep.subr.bf16.mxu0 0
        %475 = vmatpush1.bf16.msra.mxu0 %v456
        %476 = vmatprep.subr.bf16.mxu0 0
        %477 = vmatpush1.bf16.msra.mxu0 %v455
        %478 = vmatprep.subr.bf16.mxu0 0
        %479 = vmatpush1.bf16.msra.mxu0 %v454
        %480 = vmatprep.subr.bf16.mxu0 0
        %481 = vmatpush1.bf16.msra.mxu0 %v453
        %482 = vmatprep.subr.bf16.mxu0 0
        %483 = vmatpush1.bf16.msra.mxu0 %v452
        %484 = vmatprep.subr.bf16.mxu0 0
        %485 = vmatpush2.bf16.msra.mxu0 0
        %486 = vmatprep.subr.bf16.mxu0 0
        %487 = vmatpush2.bf16.msra.mxu0 0
        %488 = vmatprep.subr.bf16.mxu0 0
        %489 = vmatpush2.bf16.msra.mxu0 0
        %490 = vmatprep.subr.bf16.mxu0 0
        %491 = vmatpush2.bf16.msra.mxu0 0
        %492 = vmatprep.subr.bf16.mxu0 0
        %493 = vmatpush2.bf16.msra.mxu0 0
        %494 = vmatprep.subr.bf16.mxu0 0
        %495 = vmatpush2.bf16.msra.mxu0 0
        %496 = vmatprep.subr.bf16.mxu0 0
        %497 = vmatpush2.bf16.msra.mxu0 0
        %498 = vmatprep.subr.bf16.mxu0 0
        %499 = vmatpush2.bf16.msra.mxu0 0
        %500 = vmatprep.mubr.bf16.mxu0 0
        %501 = vmatmul.mubr.bf16.gmra.mxu0 %v415
        %v502 = vpop.f32.mrf.mxu0
        %v503 = vadd.f32 %v419, %v502
        %v504 = vpop.f32.mrf.mxu0
        %v505 = vpop.f32.mrf.mxu0
        %v506 = vpop.f32.mrf.mxu0
        %507 = vdwg.mxu0
        %508 = vadd.xlane.f32.xlu0 %v503
        %v509 = vpop.xlane.xlu0 %508
        %v510 = vrcp.pop 128.0
        %v511 = vmul.f32 %v509, %v510
        %v512 = vsub.f32 %v503, %v511
        %v513 = vmul.f32 %v512, %v512
        %514 = vadd.xlane.f32.xlu0 %v513
        %v515 = vpop.xlane.xlu0 %514
        %v516 = vmul.f32 %v515, %v510
        %v517 = vadd.f32 %v516, 1e-05
        %v518 = vrsqrt.pop %v517
        %v519 = vmul.f32 %v512, %v518
        %v520 = vlaneseq
        %v521 = vshrl.u32 %v520, 7
        %v522 = vsub.s32 2, %v521
        %v523 = vrot.slane %v268, %v522
        %v524 = vmul.f32 %v519, %v523
        %v525 = vlaneseq
        %v526 = vshrl.u32 %v525, 7
        %v527 = vsub.s32 3, %v526
        %v528 = vrot.slane %v268, %v527
        %v529 = vadd.f32 %v524, %v528
        %v530 = vld [vmem:[%s262] sm:$0xff]
        %v531 = vld [vmem:[%s262 + $0x8] sm:$0xff]
        %v532 = vld [vmem:[%s262 + $0x10] sm:$0xff]
        %v533 = vld [vmem:[%s262 + $0x18] sm:$0xff]
        %v534 = vld [vmem:[%s262 + $0x20] sm:$0xff]
        %v535 = vld [vmem:[%s262 + $0x28] sm:$0xff]
        %v536 = vld [vmem:[%s262 + $0x30] sm:$0xff]
        %v537 = vld [vmem:[%s262 + $0x38] sm:$0xff]
        %v538 = vld [vmem:[%s262 + $0x40] sm:$0xff]
        %v539 = vld [vmem:[%s262 + $0x48] sm:$0xff]
        %v540 = vld [vmem:[%s262 + $0x50] sm:$0xff]
        %v541 = vld [vmem:[%s262 + $0x58] sm:$0xff]
        %v542 = vld [vmem:[%s262 + $0x60] sm:$0xff]
        %v543 = vld [vmem:[%s262 + $0x68] sm:$0xff]
        %v544 = vld [vmem:[%s262 + $0x70] sm:$0xff]
        %v545 = vld [vmem:[%s262 + $0x78] sm:$0xff]
        %v546 = vpack.c.bf16 %v530, %v530
        %v547 = vpack.c.bf16 %v531, %v531
        %v548 = vpack.c.bf16 %v532, %v532
        %v549 = vpack.c.bf16 %v533, %v533
        %v550 = vpack.c.bf16 %v534, %v534
        %v551 = vpack.c.bf16 %v535, %v535
        %v552 = vpack.c.bf16 %v536, %v536
        %v553 = vpack.c.bf16 %v537, %v537
        %v554 = vpack.c.bf16 %v538, %v538
        %v555 = vpack.c.bf16 %v539, %v539
        %v556 = vpack.c.bf16 %v540, %v540
        %v557 = vpack.c.bf16 %v541, %v541
        %v558 = vpack.c.bf16 %v542, %v542
        %v559 = vpack.c.bf16 %v543, %v543
        %v560 = vpack.c.bf16 %v544, %v544
        %v561 = vpack.c.bf16 %v545, %v545
        %v562 = vld [vmem:[%s3] sm:$0xf]
        %v563 = vld [vmem:[%s3 + $0x4] sm:$0xf]
        %v564 = vld [vmem:[%s3 + $0x8] sm:$0xf]
        %v565 = vld [vmem:[%s3 + $0xc] sm:$0xf]
        %v566 = vld [vmem:[%s3 + $0x10] sm:$0xf]
        %v567 = vld [vmem:[%s3 + $0x14] sm:$0xf]
        %v568 = vld [vmem:[%s3 + $0x18] sm:$0xf]
        %v569 = vld [vmem:[%s3 + $0x1c] sm:$0xf]
        %v570 = vld [vmem:[%s3 + $0x20] sm:$0xf]
        %v571 = vld [vmem:[%s3 + $0x24] sm:$0xf]
        %v572 = vld [vmem:[%s3 + $0x28] sm:$0xf]
        %v573 = vld [vmem:[%s3 + $0x2c] sm:$0xf]
        %v574 = vld [vmem:[%s3 + $0x30] sm:$0xf]
        %v575 = vld [vmem:[%s3 + $0x34] sm:$0xf]
        %v576 = vld [vmem:[%s3 + $0x38] sm:$0xf]
        %v577 = vld [vmem:[%s3 + $0x3c] sm:$0xf]
        %v578 = vld [vmem:[%s3 + $0x40] sm:$0xf]
        %v579 = vld [vmem:[%s3 + $0x44] sm:$0xf]
        %v580 = vld [vmem:[%s3 + $0x48] sm:$0xf]
        %v581 = vld [vmem:[%s3 + $0x4c] sm:$0xf]
        %v582 = vld [vmem:[%s3 + $0x50] sm:$0xf]
        %v583 = vld [vmem:[%s3 + $0x54] sm:$0xf]
        %v584 = vld [vmem:[%s3 + $0x58] sm:$0xf]
        %v585 = vld [vmem:[%s3 + $0x5c] sm:$0xf]
        %v586 = vld [vmem:[%s3 + $0x60] sm:$0xf]
        %v587 = vld [vmem:[%s3 + $0x64] sm:$0xf]
        %v588 = vld [vmem:[%s3 + $0x68] sm:$0xf]
        %v589 = vld [vmem:[%s3 + $0x6c] sm:$0xf]
        %v590 = vld [vmem:[%s3 + $0x70] sm:$0xf]
        %v591 = vld [vmem:[%s3 + $0x74] sm:$0xf]
        %v592 = vld [vmem:[%s3 + $0x78] sm:$0xf]
        %v593 = vld [vmem:[%s3 + $0x7c] sm:$0xf]
        %v594 = vld [vmem:[%s3 + $0x80] sm:$0xf]
        %v595 = vld [vmem:[%s3 + $0x84] sm:$0xf]
        %v596 = vld [vmem:[%s3 + $0x88] sm:$0xf]
        %v597 = vld [vmem:[%s3 + $0x8c] sm:$0xf]
        %v598 = vld [vmem:[%s3 + $0x90] sm:$0xf]
        %v599 = vld [vmem:[%s3 + $0x94] sm:$0xf]
        %v600 = vld [vmem:[%s3 + $0x98] sm:$0xf]
        %v601 = vld [vmem:[%s3 + $0x9c] sm:$0xf]
        %v602 = vld [vmem:[%s3 + $0xa0] sm:$0xf]
        %v603 = vld [vmem:[%s3 + $0xa4] sm:$0xf]
        %v604 = vld [vmem:[%s3 + $0xa8] sm:$0xf]
        %v605 = vld [vmem:[%s3 + $0xac] sm:$0xf]
        %v606 = vld [vmem:[%s3 + $0xb0] sm:$0xf]
        %v607 = vld [vmem:[%s3 + $0xb4] sm:$0xf]
        %v608 = vld [vmem:[%s3 + $0xb8] sm:$0xf]
        %v609 = vld [vmem:[%s3 + $0xbc] sm:$0xf]
        %v610 = vld [vmem:[%s3 + $0xc0] sm:$0xf]
        %v611 = vld [vmem:[%s3 + $0xc4] sm:$0xf]
        %v612 = vld [vmem:[%s3 + $0xc8] sm:$0xf]
        %v613 = vld [vmem:[%s3 + $0xcc] sm:$0xf]
        %v614 = vld [vmem:[%s3 + $0xd0] sm:$0xf]
        %v615 = vld [vmem:[%s3 + $0xd4] sm:$0xf]
        %v616 = vld [vmem:[%s3 + $0xd8] sm:$0xf]
        %v617 = vld [vmem:[%s3 + $0xdc] sm:$0xf]
        %v618 = vld [vmem:[%s3 + $0xe0] sm:$0xf]
        %v619 = vld [vmem:[%s3 + $0xe4] sm:$0xf]
        %v620 = vld [vmem:[%s3 + $0xe8] sm:$0xf]
        %v621 = vld [vmem:[%s3 + $0xec] sm:$0xf]
        %v622 = vld [vmem:[%s3 + $0xf0] sm:$0xf]
        %v623 = vld [vmem:[%s3 + $0xf4] sm:$0xf]
        %v624 = vld [vmem:[%s3 + $0xf8] sm:$0xf]
        %v625 = vld [vmem:[%s3 + $0xfc] sm:$0xf]
        %v626 = vld [vmem:[%s3 + $0x100] sm:$0xf]
        %v627 = vld [vmem:[%s3 + $0x104] sm:$0xf]
        %v628 = vld [vmem:[%s3 + $0x108] sm:$0xf]
        %v629 = vld [vmem:[%s3 + $0x10c] sm:$0xf]
        %v630 = vld [vmem:[%s3 + $0x110] sm:$0xf]
        %v631 = vld [vmem:[%s3 + $0x114] sm:$0xf]
        %v632 = vld [vmem:[%s3 + $0x118] sm:$0xf]
        %v633 = vld [vmem:[%s3 + $0x11c] sm:$0xf]
        %v634 = vld [vmem:[%s3 + $0x120] sm:$0xf]
        %v635 = vld [vmem:[%s3 + $0x124] sm:$0xf]
        %v636 = vld [vmem:[%s3 + $0x128] sm:$0xf]
        %v637 = vld [vmem:[%s3 + $0x12c] sm:$0xf]
        %v638 = vld [vmem:[%s3 + $0x130] sm:$0xf]
        %v639 = vld [vmem:[%s3 + $0x134] sm:$0xf]
        %v640 = vld [vmem:[%s3 + $0x138] sm:$0xf]
        %v641 = vld [vmem:[%s3 + $0x13c] sm:$0xf]
        %v642 = vld [vmem:[%s3 + $0x140] sm:$0xf]
        %v643 = vld [vmem:[%s3 + $0x144] sm:$0xf]
        %v644 = vld [vmem:[%s3 + $0x148] sm:$0xf]
        %v645 = vld [vmem:[%s3 + $0x14c] sm:$0xf]
        %v646 = vld [vmem:[%s3 + $0x150] sm:$0xf]
        %v647 = vld [vmem:[%s3 + $0x154] sm:$0xf]
        %v648 = vld [vmem:[%s3 + $0x158] sm:$0xf]
        %v649 = vld [vmem:[%s3 + $0x15c] sm:$0xf]
        %v650 = vld [vmem:[%s3 + $0x160] sm:$0xf]
        %v651 = vld [vmem:[%s3 + $0x164] sm:$0xf]
        %v652 = vld [vmem:[%s3 + $0x168] sm:$0xf]
        %v653 = vld [vmem:[%s3 + $0x16c] sm:$0xf]
        %v654 = vld [vmem:[%s3 + $0x170] sm:$0xf]
        %v655 = vld [vmem:[%s3 + $0x174] sm:$0xf]
        %v656 = vld [vmem:[%s3 + $0x178] sm:$0xf]
        %v657 = vld [vmem:[%s3 + $0x17c] sm:$0xf]
        %v658 = vld [vmem:[%s3 + $0x180] sm:$0xf]
        %v659 = vld [vmem:[%s3 + $0x184] sm:$0xf]
        %v660 = vld [vmem:[%s3 + $0x188] sm:$0xf]
        %v661 = vld [vmem:[%s3 + $0x18c] sm:$0xf]
        %v662 = vld [vmem:[%s3 + $0x190] sm:$0xf]
        %v663 = vld [vmem:[%s3 + $0x194] sm:$0xf]
        %v664 = vld [vmem:[%s3 + $0x198] sm:$0xf]
        %v665 = vld [vmem:[%s3 + $0x19c] sm:$0xf]
        %v666 = vld [vmem:[%s3 + $0x1a0] sm:$0xf]
        %v667 = vld [vmem:[%s3 + $0x1a4] sm:$0xf]
        %v668 = vld [vmem:[%s3 + $0x1a8] sm:$0xf]
        %v669 = vld [vmem:[%s3 + $0x1ac] sm:$0xf]
        %v670 = vld [vmem:[%s3 + $0x1b0] sm:$0xf]
        %v671 = vld [vmem:[%s3 + $0x1b4] sm:$0xf]
        %v672 = vld [vmem:[%s3 + $0x1b8] sm:$0xf]
        %v673 = vld [vmem:[%s3 + $0x1bc] sm:$0xf]
        %v674 = vld [vmem:[%s3 + $0x1c0] sm:$0xf]
        %v675 = vld [vmem:[%s3 + $0x1c4] sm:$0xf]
        %v676 = vld [vmem:[%s3 + $0x1c8] sm:$0xf]
        %v677 = vld [vmem:[%s3 + $0x1cc] sm:$0xf]
        %v678 = vld [vmem:[%s3 + $0x1d0] sm:$0xf]
        %v679 = vld [vmem:[%s3 + $0x1d4] sm:$0xf]
        %v680 = vld [vmem:[%s3 + $0x1d8] sm:$0xf]
        %v681 = vld [vmem:[%s3 + $0x1dc] sm:$0xf]
        %v682 = vld [vmem:[%s3 + $0x1e0] sm:$0xf]
        %v683 = vld [vmem:[%s3 + $0x1e4] sm:$0xf]
        %v684 = vld [vmem:[%s3 + $0x1e8] sm:$0xf]
        %v685 = vld [vmem:[%s3 + $0x1ec] sm:$0xf]
        %v686 = vld [vmem:[%s3 + $0x1f0] sm:$0xf]
        %v687 = vld [vmem:[%s3 + $0x1f4] sm:$0xf]
        %v688 = vld [vmem:[%s3 + $0x1f8] sm:$0xf]
        %v689 = vld [vmem:[%s3 + $0x1fc] sm:$0xf]
        %v690 = vld [vmem:[%s3 + $0x200] sm:$0xf]
        %v691 = vld [vmem:[%s3 + $0x204] sm:$0xf]
        %v692 = vld [vmem:[%s3 + $0x208] sm:$0xf]
        %v693 = vld [vmem:[%s3 + $0x20c] sm:$0xf]
        %v694 = vld [vmem:[%s3 + $0x210] sm:$0xf]
        %v695 = vld [vmem:[%s3 + $0x214] sm:$0xf]
        %v696 = vld [vmem:[%s3 + $0x218] sm:$0xf]
        %v697 = vld [vmem:[%s3 + $0x21c] sm:$0xf]
        %v698 = vld [vmem:[%s3 + $0x220] sm:$0xf]
        %v699 = vld [vmem:[%s3 + $0x224] sm:$0xf]
        %v700 = vld [vmem:[%s3 + $0x228] sm:$0xf]
        %v701 = vld [vmem:[%s3 + $0x22c] sm:$0xf]
        %v702 = vld [vmem:[%s3 + $0x230] sm:$0xf]
        %v703 = vld [vmem:[%s3 + $0x234] sm:$0xf]
        %v704 = vld [vmem:[%s3 + $0x238] sm:$0xf]
        %v705 = vld [vmem:[%s3 + $0x23c] sm:$0xf]
        %v706 = vld [vmem:[%s3 + $0x240] sm:$0xf]
        %v707 = vld [vmem:[%s3 + $0x244] sm:$0xf]
        %v708 = vld [vmem:[%s3 + $0x248] sm:$0xf]
        %v709 = vld [vmem:[%s3 + $0x24c] sm:$0xf]
        %v710 = vld [vmem:[%s3 + $0x250] sm:$0xf]
        %v711 = vld [vmem:[%s3 + $0x254] sm:$0xf]
        %v712 = vld [vmem:[%s3 + $0x258] sm:$0xf]
        %v713 = vld [vmem:[%s3 + $0x25c] sm:$0xf]
        %v714 = vld [vmem:[%s3 + $0x260] sm:$0xf]
        %v715 = vld [vmem:[%s3 + $0x264] sm:$0xf]
        %v716 = vld [vmem:[%s3 + $0x268] sm:$0xf]
        %v717 = vld [vmem:[%s3 + $0x26c] sm:$0xf]
        %v718 = vld [vmem:[%s3 + $0x270] sm:$0xf]
        %v719 = vld [vmem:[%s3 + $0x274] sm:$0xf]
        %v720 = vld [vmem:[%s3 + $0x278] sm:$0xf]
        %v721 = vld [vmem:[%s3 + $0x27c] sm:$0xf]
        %v722 = vld [vmem:[%s3 + $0x280] sm:$0xf]
        %v723 = vld [vmem:[%s3 + $0x284] sm:$0xf]
        %v724 = vld [vmem:[%s3 + $0x288] sm:$0xf]
        %v725 = vld [vmem:[%s3 + $0x28c] sm:$0xf]
        %v726 = vld [vmem:[%s3 + $0x290] sm:$0xf]
        %v727 = vld [vmem:[%s3 + $0x294] sm:$0xf]
        %v728 = vld [vmem:[%s3 + $0x298] sm:$0xf]
        %v729 = vld [vmem:[%s3 + $0x29c] sm:$0xf]
        %v730 = vld [vmem:[%s3 + $0x2a0] sm:$0xf]
        %v731 = vld [vmem:[%s3 + $0x2a4] sm:$0xf]
        %v732 = vld [vmem:[%s3 + $0x2a8] sm:$0xf]
        %v733 = vld [vmem:[%s3 + $0x2ac] sm:$0xf]
        %v734 = vld [vmem:[%s3 + $0x2b0] sm:$0xf]
        %v735 = vld [vmem:[%s3 + $0x2b4] sm:$0xf]
        %v736 = vld [vmem:[%s3 + $0x2b8] sm:$0xf]
        %v737 = vld [vmem:[%s3 + $0x2bc] sm:$0xf]
        %v738 = vld [vmem:[%s3 + $0x2c0] sm:$0xf]
        %v739 = vld [vmem:[%s3 + $0x2c4] sm:$0xf]
        %v740 = vld [vmem:[%s3 + $0x2c8] sm:$0xf]
        %v741 = vld [vmem:[%s3 + $0x2cc] sm:$0xf]
        %v742 = vld [vmem:[%s3 + $0x2d0] sm:$0xf]
        %v743 = vld [vmem:[%s3 + $0x2d4] sm:$0xf]
        %v744 = vld [vmem:[%s3 + $0x2d8] sm:$0xf]
        %v745 = vld [vmem:[%s3 + $0x2dc] sm:$0xf]
        %v746 = vld [vmem:[%s3 + $0x2e0] sm:$0xf]
        %v747 = vld [vmem:[%s3 + $0x2e4] sm:$0xf]
        %v748 = vld [vmem:[%s3 + $0x2e8] sm:$0xf]
        %v749 = vld [vmem:[%s3 + $0x2ec] sm:$0xf]
        %v750 = vld [vmem:[%s3 + $0x2f0] sm:$0xf]
        %v751 = vld [vmem:[%s3 + $0x2f4] sm:$0xf]
        %v752 = vld [vmem:[%s3 + $0x2f8] sm:$0xf]
        %v753 = vld [vmem:[%s3 + $0x2fc] sm:$0xf]
        %v754 = vld [vmem:[%s3 + $0x300] sm:$0xf]
        %v755 = vld [vmem:[%s3 + $0x304] sm:$0xf]
        %v756 = vld [vmem:[%s3 + $0x308] sm:$0xf]
        %v757 = vld [vmem:[%s3 + $0x30c] sm:$0xf]
        %v758 = vld [vmem:[%s3 + $0x310] sm:$0xf]
        %v759 = vld [vmem:[%s3 + $0x314] sm:$0xf]
        %v760 = vld [vmem:[%s3 + $0x318] sm:$0xf]
        %v761 = vld [vmem:[%s3 + $0x31c] sm:$0xf]
        %v762 = vld [vmem:[%s3 + $0x320] sm:$0xf]
        %v763 = vld [vmem:[%s3 + $0x324] sm:$0xf]
        %v764 = vld [vmem:[%s3 + $0x328] sm:$0xf]
        %v765 = vld [vmem:[%s3 + $0x32c] sm:$0xf]
        %v766 = vld [vmem:[%s3 + $0x330] sm:$0xf]
        %v767 = vld [vmem:[%s3 + $0x334] sm:$0xf]
        %v768 = vld [vmem:[%s3 + $0x338] sm:$0xf]
        %v769 = vld [vmem:[%s3 + $0x33c] sm:$0xf]
        %v770 = vld [vmem:[%s3 + $0x340] sm:$0xf]
        %v771 = vld [vmem:[%s3 + $0x344] sm:$0xf]
        %v772 = vld [vmem:[%s3 + $0x348] sm:$0xf]
        %v773 = vld [vmem:[%s3 + $0x34c] sm:$0xf]
        %v774 = vld [vmem:[%s3 + $0x350] sm:$0xf]
        %v775 = vld [vmem:[%s3 + $0x354] sm:$0xf]
        %v776 = vld [vmem:[%s3 + $0x358] sm:$0xf]
        %v777 = vld [vmem:[%s3 + $0x35c] sm:$0xf]
        %v778 = vld [vmem:[%s3 + $0x360] sm:$0xf]
        %v779 = vld [vmem:[%s3 + $0x364] sm:$0xf]
        %v780 = vld [vmem:[%s3 + $0x368] sm:$0xf]
        %v781 = vld [vmem:[%s3 + $0x36c] sm:$0xf]
        %v782 = vld [vmem:[%s3 + $0x370] sm:$0xf]
        %v783 = vld [vmem:[%s3 + $0x374] sm:$0xf]
        %v784 = vld [vmem:[%s3 + $0x378] sm:$0xf]
        %v785 = vld [vmem:[%s3 + $0x37c] sm:$0xf]
        %v786 = vld [vmem:[%s3 + $0x380] sm:$0xf]
        %v787 = vld [vmem:[%s3 + $0x384] sm:$0xf]
        %v788 = vld [vmem:[%s3 + $0x388] sm:$0xf]
        %v789 = vld [vmem:[%s3 + $0x38c] sm:$0xf]
        %v790 = vld [vmem:[%s3 + $0x390] sm:$0xf]
        %v791 = vld [vmem:[%s3 + $0x394] sm:$0xf]
        %v792 = vld [vmem:[%s3 + $0x398] sm:$0xf]
        %v793 = vld [vmem:[%s3 + $0x39c] sm:$0xf]
        %v794 = vld [vmem:[%s3 + $0x3a0] sm:$0xf]
        %v795 = vld [vmem:[%s3 + $0x3a4] sm:$0xf]
        %v796 = vld [vmem:[%s3 + $0x3a8] sm:$0xf]
        %v797 = vld [vmem:[%s3 + $0x3ac] sm:$0xf]
        %v798 = vld [vmem:[%s3 + $0x3b0] sm:$0xf]
        %v799 = vld [vmem:[%s3 + $0x3b4] sm:$0xf]
        %v800 = vld [vmem:[%s3 + $0x3b8] sm:$0xf]
        %v801 = vld [vmem:[%s3 + $0x3bc] sm:$0xf]
        %v802 = vld [vmem:[%s3 + $0x3c0] sm:$0xf]
        %v803 = vld [vmem:[%s3 + $0x3c4] sm:$0xf]
        %v804 = vld [vmem:[%s3 + $0x3c8] sm:$0xf]
        %v805 = vld [vmem:[%s3 + $0x3cc] sm:$0xf]
        %v806 = vld [vmem:[%s3 + $0x3d0] sm:$0xf]
        %v807 = vld [vmem:[%s3 + $0x3d4] sm:$0xf]
        %v808 = vld [vmem:[%s3 + $0x3d8] sm:$0xf]
        %v809 = vld [vmem:[%s3 + $0x3dc] sm:$0xf]
        %v810 = vld [vmem:[%s3 + $0x3e0] sm:$0xf]
        %v811 = vld [vmem:[%s3 + $0x3e4] sm:$0xf]
        %v812 = vld [vmem:[%s3 + $0x3e8] sm:$0xf]
        %v813 = vld [vmem:[%s3 + $0x3ec] sm:$0xf]
        %v814 = vld [vmem:[%s3 + $0x3f0] sm:$0xf]
        %v815 = vld [vmem:[%s3 + $0x3f4] sm:$0xf]
        %v816 = vld [vmem:[%s3 + $0x3f8] sm:$0xf]
        %v817 = vld [vmem:[%s3 + $0x3fc] sm:$0xf]
        %v818 = vlaneseq
        %v819 = vshrl.u32 %v818, 7
        %v820 = vsub.s32 4, %v819
        %v821 = vrot.slane %v268, %v820
        %v1078 = vunpack.c.l.b16 %v562
        %v1079 = vunpack.c.l.b16 %v563
        %v1080 = vunpack.c.l.b16 %v564
        %v1081 = vunpack.c.l.b16 %v565
        %v1082 = vunpack.c.l.b16 %v566
        %v1083 = vunpack.c.l.b16 %v567
        %v1084 = vunpack.c.l.b16 %v568
        %v1085 = vunpack.c.l.b16 %v569
        %v1086 = vunpack.c.l.b16 %v570
        %v1087 = vunpack.c.l.b16 %v571
        %v1088 = vunpack.c.l.b16 %v572
        %v1089 = vunpack.c.l.b16 %v573
        %v1090 = vunpack.c.l.b16 %v574
        %v1091 = vunpack.c.l.b16 %v575
        %v1092 = vunpack.c.l.b16 %v576
        %v1093 = vunpack.c.l.b16 %v577
        %v1094 = vunpack.c.l.b16 %v578
        %v1095 = vunpack.c.l.b16 %v579
        %v1096 = vunpack.c.l.b16 %v580
        %v1097 = vunpack.c.l.b16 %v581
        %v1098 = vunpack.c.l.b16 %v582
        %v1099 = vunpack.c.l.b16 %v583
        %v1100 = vunpack.c.l.b16 %v584
        %v1101 = vunpack.c.l.b16 %v585
        %v1102 = vunpack.c.l.b16 %v586
        %v1103 = vunpack.c.l.b16 %v587
        %v1104 = vunpack.c.l.b16 %v588
        %v1105 = vunpack.c.l.b16 %v589
        %v1106 = vunpack.c.l.b16 %v590
        %v1107 = vunpack.c.l.b16 %v591
        %v1108 = vunpack.c.l.b16 %v592
        %v1109 = vunpack.c.l.b16 %v593
        %v1110 = vunpack.c.l.b16 %v594
        %v1111 = vunpack.c.l.b16 %v595
        %v1112 = vunpack.c.l.b16 %v596
        %v1113 = vunpack.c.l.b16 %v597
        %v1114 = vunpack.c.l.b16 %v598
        %v1115 = vunpack.c.l.b16 %v599
        %v1116 = vunpack.c.l.b16 %v600
        %v1117 = vunpack.c.l.b16 %v601
        %v1118 = vunpack.c.l.b16 %v602
        %v1119 = vunpack.c.l.b16 %v603
        %v1120 = vunpack.c.l.b16 %v604
        %v1121 = vunpack.c.l.b16 %v605
        %v1122 = vunpack.c.l.b16 %v606
        %v1123 = vunpack.c.l.b16 %v607
        %v1124 = vunpack.c.l.b16 %v608
        %v1125 = vunpack.c.l.b16 %v609
        %v1126 = vunpack.c.l.b16 %v610
        %v1127 = vunpack.c.l.b16 %v611
        %v1128 = vunpack.c.l.b16 %v612
        %v1129 = vunpack.c.l.b16 %v613
        %v1130 = vunpack.c.l.b16 %v614
        %v1131 = vunpack.c.l.b16 %v615
        %v1132 = vunpack.c.l.b16 %v616
        %v1133 = vunpack.c.l.b16 %v617
        %v1134 = vunpack.c.l.b16 %v618
        %v1135 = vunpack.c.l.b16 %v619
        %v1136 = vunpack.c.l.b16 %v620
        %v1137 = vunpack.c.l.b16 %v621
        %v1138 = vunpack.c.l.b16 %v622
        %v1139 = vunpack.c.l.b16 %v623
        %v1140 = vunpack.c.l.b16 %v624
        %v1141 = vunpack.c.l.b16 %v625
        %v1142 = vunpack.c.l.b16 %v626
        %v1143 = vunpack.c.l.b16 %v627
        %v1144 = vunpack.c.l.b16 %v628
        %v1145 = vunpack.c.l.b16 %v629
        %v1146 = vunpack.c.l.b16 %v630
        %v1147 = vunpack.c.l.b16 %v631
        %v1148 = vunpack.c.l.b16 %v632
        %v1149 = vunpack.c.l.b16 %v633
        %v1150 = vunpack.c.l.b16 %v634
        %v1151 = vunpack.c.l.b16 %v635
        %v1152 = vunpack.c.l.b16 %v636
        %v1153 = vunpack.c.l.b16 %v637
        %v1154 = vunpack.c.l.b16 %v638
        %v1155 = vunpack.c.l.b16 %v639
        %v1156 = vunpack.c.l.b16 %v640
        %v1157 = vunpack.c.l.b16 %v641
        %v1158 = vunpack.c.l.b16 %v642
        %v1159 = vunpack.c.l.b16 %v643
        %v1160 = vunpack.c.l.b16 %v644
        %v1161 = vunpack.c.l.b16 %v645
        %v1162 = vunpack.c.l.b16 %v646
        %v1163 = vunpack.c.l.b16 %v647
        %v1164 = vunpack.c.l.b16 %v648
        %v1165 = vunpack.c.l.b16 %v649
        %v1166 = vunpack.c.l.b16 %v650
        %v1167 = vunpack.c.l.b16 %v651
        %v1168 = vunpack.c.l.b16 %v652
        %v1169 = vunpack.c.l.b16 %v653
        %v1170 = vunpack.c.l.b16 %v654
        %v1171 = vunpack.c.l.b16 %v655
        %v1172 = vunpack.c.l.b16 %v656
        %v1173 = vunpack.c.l.b16 %v657
        %v1174 = vunpack.c.l.b16 %v658
        %v1175 = vunpack.c.l.b16 %v659
        %v1176 = vunpack.c.l.b16 %v660
        %v1177 = vunpack.c.l.b16 %v661
        %v1178 = vunpack.c.l.b16 %v662
        %v1179 = vunpack.c.l.b16 %v663
        %v1180 = vunpack.c.l.b16 %v664
        %v1181 = vunpack.c.l.b16 %v665
        %v1182 = vunpack.c.l.b16 %v666
        %v1183 = vunpack.c.l.b16 %v667
        %v1184 = vunpack.c.l.b16 %v668
        %v1185 = vunpack.c.l.b16 %v669
        %v1186 = vunpack.c.l.b16 %v670
        %v1187 = vunpack.c.l.b16 %v671
        %v1188 = vunpack.c.l.b16 %v672
        %v1189 = vunpack.c.l.b16 %v673
        %v1190 = vunpack.c.l.b16 %v674
        %v1191 = vunpack.c.l.b16 %v675
        %v1192 = vunpack.c.l.b16 %v676
        %v1193 = vunpack.c.l.b16 %v677
        %v1194 = vunpack.c.l.b16 %v678
        %v1195 = vunpack.c.l.b16 %v679
        %v1196 = vunpack.c.l.b16 %v680
        %v1197 = vunpack.c.l.b16 %v681
        %v1198 = vunpack.c.l.b16 %v682
        %v1199 = vunpack.c.l.b16 %v683
        %v1200 = vunpack.c.l.b16 %v684
        %v1201 = vunpack.c.l.b16 %v685
        %v1202 = vunpack.c.l.b16 %v686
        %v1203 = vunpack.c.l.b16 %v687
        %v1204 = vunpack.c.l.b16 %v688
        %v1205 = vunpack.c.l.b16 %v689
        %v1206 = vunpack.c.l.b16 %v690
        %v1207 = vunpack.c.l.b16 %v691
        %v1208 = vunpack.c.l.b16 %v692
        %v1209 = vunpack.c.l.b16 %v693
        %v1210 = vunpack.c.l.b16 %v694
        %v1211 = vunpack.c.l.b16 %v695
        %v1212 = vunpack.c.l.b16 %v696
        %v1213 = vunpack.c.l.b16 %v697
        %v1214 = vunpack.c.l.b16 %v698
        %v1215 = vunpack.c.l.b16 %v699
        %v1216 = vunpack.c.l.b16 %v700
        %v1217 = vunpack.c.l.b16 %v701
        %v1218 = vunpack.c.l.b16 %v702
        %v1219 = vunpack.c.l.b16 %v703
        %v1220 = vunpack.c.l.b16 %v704
        %v1221 = vunpack.c.l.b16 %v705
        %v1222 = vunpack.c.l.b16 %v706
        %v1223 = vunpack.c.l.b16 %v707
        %v1224 = vunpack.c.l.b16 %v708
        %v1225 = vunpack.c.l.b16 %v709
        %v1226 = vunpack.c.l.b16 %v710
        %v1227 = vunpack.c.l.b16 %v711
        %v1228 = vunpack.c.l.b16 %v712
        %v1229 = vunpack.c.l.b16 %v713
        %v1230 = vunpack.c.l.b16 %v714
        %v1231 = vunpack.c.l.b16 %v715
        %v1232 = vunpack.c.l.b16 %v716
        %v1233 = vunpack.c.l.b16 %v717
        %v1234 = vunpack.c.l.b16 %v718
        %v1235 = vunpack.c.l.b16 %v719
        %v1236 = vunpack.c.l.b16 %v720
        %v1237 = vunpack.c.l.b16 %v721
        %v1238 = vunpack.c.l.b16 %v722
        %v1239 = vunpack.c.l.b16 %v723
        %v1240 = vunpack.c.l.b16 %v724
        %v1241 = vunpack.c.l.b16 %v725
        %v1242 = vunpack.c.l.b16 %v726
        %v1243 = vunpack.c.l.b16 %v727
        %v1244 = vunpack.c.l.b16 %v728
        %v1245 = vunpack.c.l.b16 %v729
        %v1246 = vunpack.c.l.b16 %v730
        %v1247 = vunpack.c.l.b16 %v731
        %v1248 = vunpack.c.l.b16 %v732
        %v1249 = vunpack.c.l.b16 %v733
        %v1250 = vunpack.c.l.b16 %v734
        %v1251 = vunpack.c.l.b16 %v735
        %v1252 = vunpack.c.l.b16 %v736
        %v1253 = vunpack.c.l.b16 %v737
        %v1254 = vunpack.c.l.b16 %v738
        %v1255 = vunpack.c.l.b16 %v739
        %v1256 = vunpack.c.l.b16 %v740
        %v1257 = vunpack.c.l.b16 %v741
        %v1258 = vunpack.c.l.b16 %v742
        %v1259 = vunpack.c.l.b16 %v743
        %v1260 = vunpack.c.l.b16 %v744
        %v1261 = vunpack.c.l.b16 %v745
        %v1262 = vunpack.c.l.b16 %v746
        %v1263 = vunpack.c.l.b16 %v747
        %v1264 = vunpack.c.l.b16 %v748
        %v1265 = vunpack.c.l.b16 %v749
        %v1266 = vunpack.c.l.b16 %v750
        %v1267 = vunpack.c.l.b16 %v751
        %v1268 = vunpack.c.l.b16 %v752
        %v1269 = vunpack.c.l.b16 %v753
        %v1270 = vunpack.c.l.b16 %v754
        %v1271 = vunpack.c.l.b16 %v755
        %v1272 = vunpack.c.l.b16 %v756
        %v1273 = vunpack.c.l.b16 %v757
        %v1274 = vunpack.c.l.b16 %v758
        %v1275 = vunpack.c.l.b16 %v759
        %v1276 = vunpack.c.l.b16 %v760
        %v1277 = vunpack.c.l.b16 %v761
        %v1278 = vunpack.c.l.b16 %v762
        %v1279 = vunpack.c.l.b16 %v763
        %v1280 = vunpack.c.l.b16 %v764
        %v1281 = vunpack.c.l.b16 %v765
        %v1282 = vunpack.c.l.b16 %v766
        %v1283 = vunpack.c.l.b16 %v767
        %v1284 = vunpack.c.l.b16 %v768
        %v1285 = vunpack.c.l.b16 %v769
        %v1286 = vunpack.c.l.b16 %v770
        %v1287 = vunpack.c.l.b16 %v771
        %v1288 = vunpack.c.l.b16 %v772
        %v1289 = vunpack.c.l.b16 %v773
        %v1290 = vunpack.c.l.b16 %v774
        %v1291 = vunpack.c.l.b16 %v775
        %v1292 = vunpack.c.l.b16 %v776
        %v1293 = vunpack.c.l.b16 %v777
        %v1294 = vunpack.c.l.b16 %v778
        %v1295 = vunpack.c.l.b16 %v779
        %v1296 = vunpack.c.l.b16 %v780
        %v1297 = vunpack.c.l.b16 %v781
        %v1298 = vunpack.c.l.b16 %v782
        %v1299 = vunpack.c.l.b16 %v783
        %v1300 = vunpack.c.l.b16 %v784
        %v1301 = vunpack.c.l.b16 %v785
        %v1302 = vunpack.c.l.b16 %v786
        %v1303 = vunpack.c.l.b16 %v787
        %v1304 = vunpack.c.l.b16 %v788
        %v1305 = vunpack.c.l.b16 %v789
        %v1306 = vunpack.c.l.b16 %v790
        %v1307 = vunpack.c.l.b16 %v791
        %v1308 = vunpack.c.l.b16 %v792
        %v1309 = vunpack.c.l.b16 %v793
        %v1310 = vunpack.c.l.b16 %v794
        %v1311 = vunpack.c.l.b16 %v795
        %v1312 = vunpack.c.l.b16 %v796
        %v1313 = vunpack.c.l.b16 %v797
        %v1314 = vunpack.c.l.b16 %v798
        %v1315 = vunpack.c.l.b16 %v799
        %v1316 = vunpack.c.l.b16 %v800
        %v1317 = vunpack.c.l.b16 %v801
        %v1318 = vunpack.c.l.b16 %v802
        %v1319 = vunpack.c.l.b16 %v803
        %v1320 = vunpack.c.l.b16 %v804
        %v1321 = vunpack.c.l.b16 %v805
        %v1322 = vunpack.c.l.b16 %v806
        %v1323 = vunpack.c.l.b16 %v807
        %v1324 = vunpack.c.l.b16 %v808
        %v1325 = vunpack.c.l.b16 %v809
        %v1326 = vunpack.c.l.b16 %v810
        %v1327 = vunpack.c.l.b16 %v811
        %v1328 = vunpack.c.l.b16 %v812
        %v1329 = vunpack.c.l.b16 %v813
        %v1330 = vunpack.c.l.b16 %v814
        %v1331 = vunpack.c.l.b16 %v815
        %v1332 = vunpack.c.l.b16 %v816
        %v1333 = vunpack.c.l.b16 %v817
        %v1334 = vpack.c.b16 %v1079, %v1078
        %v1335 = vpack.c.b16 %v1081, %v1080
        %v1336 = vpack.c.b16 %v1083, %v1082
        %v1337 = vpack.c.b16 %v1085, %v1084
        %v1338 = vpack.c.b16 %v1087, %v1086
        %v1339 = vpack.c.b16 %v1089, %v1088
        %v1340 = vpack.c.b16 %v1091, %v1090
        %v1341 = vpack.c.b16 %v1093, %v1092
        %v1342 = vpack.c.b16 %v1095, %v1094
        %v1343 = vpack.c.b16 %v1097, %v1096
        %v1344 = vpack.c.b16 %v1099, %v1098
        %v1345 = vpack.c.b16 %v1101, %v1100
        %v1346 = vpack.c.b16 %v1103, %v1102
        %v1347 = vpack.c.b16 %v1105, %v1104
        %v1348 = vpack.c.b16 %v1107, %v1106
        %v1349 = vpack.c.b16 %v1109, %v1108
        %v1350 = vpack.c.b16 %v1111, %v1110
        %v1351 = vpack.c.b16 %v1113, %v1112
        %v1352 = vpack.c.b16 %v1115, %v1114
        %v1353 = vpack.c.b16 %v1117, %v1116
        %v1354 = vpack.c.b16 %v1119, %v1118
        %v1355 = vpack.c.b16 %v1121, %v1120
        %v1356 = vpack.c.b16 %v1123, %v1122
        %v1357 = vpack.c.b16 %v1125, %v1124
        %v1358 = vpack.c.b16 %v1127, %v1126
        %v1359 = vpack.c.b16 %v1129, %v1128
        %v1360 = vpack.c.b16 %v1131, %v1130
        %v1361 = vpack.c.b16 %v1133, %v1132
        %v1362 = vpack.c.b16 %v1135, %v1134
        %v1363 = vpack.c.b16 %v1137, %v1136
        %v1364 = vpack.c.b16 %v1139, %v1138
        %v1365 = vpack.c.b16 %v1141, %v1140
        %v1366 = vpack.c.b16 %v1143, %v1142
        %v1367 = vpack.c.b16 %v1145, %v1144
        %v1368 = vpack.c.b16 %v1147, %v1146
        %v1369 = vpack.c.b16 %v1149, %v1148
        %v1370 = vpack.c.b16 %v1151, %v1150
        %v1371 = vpack.c.b16 %v1153, %v1152
        %v1372 = vpack.c.b16 %v1155, %v1154
        %v1373 = vpack.c.b16 %v1157, %v1156
        %v1374 = vpack.c.b16 %v1159, %v1158
        %v1375 = vpack.c.b16 %v1161, %v1160
        %v1376 = vpack.c.b16 %v1163, %v1162
        %v1377 = vpack.c.b16 %v1165, %v1164
        %v1378 = vpack.c.b16 %v1167, %v1166
        %v1379 = vpack.c.b16 %v1169, %v1168
        %v1380 = vpack.c.b16 %v1171, %v1170
        %v1381 = vpack.c.b16 %v1173, %v1172
        %v1382 = vpack.c.b16 %v1175, %v1174
        %v1383 = vpack.c.b16 %v1177, %v1176
        %v1384 = vpack.c.b16 %v1179, %v1178
        %v1385 = vpack.c.b16 %v1181, %v1180
        %v1386 = vpack.c.b16 %v1183, %v1182
        %v1387 = vpack.c.b16 %v1185, %v1184
        %v1388 = vpack.c.b16 %v1187, %v1186
        %v1389 = vpack.c.b16 %v1189, %v1188
        %v1390 = vpack.c.b16 %v1191, %v1190
        %v1391 = vpack.c.b16 %v1193, %v1192
        %v1392 = vpack.c.b16 %v1195, %v1194
        %v1393 = vpack.c.b16 %v1197, %v1196
        %v1394 = vpack.c.b16 %v1199, %v1198
        %v1395 = vpack.c.b16 %v1201, %v1200
        %v1396 = vpack.c.b16 %v1203, %v1202
        %v1397 = vpack.c.b16 %v1205, %v1204
        %v1398 = vpack.c.b16 %v1207, %v1206
        %v1399 = vpack.c.b16 %v1209, %v1208
        %v1400 = vpack.c.b16 %v1211, %v1210
        %v1401 = vpack.c.b16 %v1213, %v1212
        %v1402 = vpack.c.b16 %v1215, %v1214
        %v1403 = vpack.c.b16 %v1217, %v1216
        %v1404 = vpack.c.b16 %v1219, %v1218
        %v1405 = vpack.c.b16 %v1221, %v1220
        %v1406 = vpack.c.b16 %v1223, %v1222
        %v1407 = vpack.c.b16 %v1225, %v1224
        %v1408 = vpack.c.b16 %v1227, %v1226
        %v1409 = vpack.c.b16 %v1229, %v1228
        %v1410 = vpack.c.b16 %v1231, %v1230
        %v1411 = vpack.c.b16 %v1233, %v1232
        %v1412 = vpack.c.b16 %v1235, %v1234
        %v1413 = vpack.c.b16 %v1237, %v1236
        %v1414 = vpack.c.b16 %v1239, %v1238
        %v1415 = vpack.c.b16 %v1241, %v1240
        %v1416 = vpack.c.b16 %v1243, %v1242
        %v1417 = vpack.c.b16 %v1245, %v1244
        %v1418 = vpack.c.b16 %v1247, %v1246
        %v1419 = vpack.c.b16 %v1249, %v1248
        %v1420 = vpack.c.b16 %v1251, %v1250
        %v1421 = vpack.c.b16 %v1253, %v1252
        %v1422 = vpack.c.b16 %v1255, %v1254
        %v1423 = vpack.c.b16 %v1257, %v1256
        %v1424 = vpack.c.b16 %v1259, %v1258
        %v1425 = vpack.c.b16 %v1261, %v1260
        %v1426 = vpack.c.b16 %v1263, %v1262
        %v1427 = vpack.c.b16 %v1265, %v1264
        %v1428 = vpack.c.b16 %v1267, %v1266
        %v1429 = vpack.c.b16 %v1269, %v1268
        %v1430 = vpack.c.b16 %v1271, %v1270
        %v1431 = vpack.c.b16 %v1273, %v1272
        %v1432 = vpack.c.b16 %v1275, %v1274
        %v1433 = vpack.c.b16 %v1277, %v1276
        %v1434 = vpack.c.b16 %v1279, %v1278
        %v1435 = vpack.c.b16 %v1281, %v1280
        %v1436 = vpack.c.b16 %v1283, %v1282
        %v1437 = vpack.c.b16 %v1285, %v1284
        %v1438 = vpack.c.b16 %v1287, %v1286
        %v1439 = vpack.c.b16 %v1289, %v1288
        %v1440 = vpack.c.b16 %v1291, %v1290
        %v1441 = vpack.c.b16 %v1293, %v1292
        %v1442 = vpack.c.b16 %v1295, %v1294
        %v1443 = vpack.c.b16 %v1297, %v1296
        %v1444 = vpack.c.b16 %v1299, %v1298
        %v1445 = vpack.c.b16 %v1301, %v1300
        %v1446 = vpack.c.b16 %v1303, %v1302
        %v1447 = vpack.c.b16 %v1305, %v1304
        %v1448 = vpack.c.b16 %v1307, %v1306
        %v1449 = vpack.c.b16 %v1309, %v1308
        %v1450 = vpack.c.b16 %v1311, %v1310
        %v1451 = vpack.c.b16 %v1313, %v1312
        %v1452 = vpack.c.b16 %v1315, %v1314
        %v1453 = vpack.c.b16 %v1317, %v1316
        %v1454 = vpack.c.b16 %v1319, %v1318
        %v1455 = vpack.c.b16 %v1321, %v1320
        %v1456 = vpack.c.b16 %v1323, %v1322
        %v1457 = vpack.c.b16 %v1325, %v1324
        %v1458 = vpack.c.b16 %v1327, %v1326
        %v1459 = vpack.c.b16 %v1329, %v1328
        %v1460 = vpack.c.b16 %v1331, %v1330
        %v1461 = vpack.c.b16 %v1333, %v1332
        %1590 = vmatprep.subr.bf16.mxu0 0
        %1591 = vmatpush1.bf16.msra.mxu0 %v1341
        %1592 = vmatprep.subr.bf16.mxu0 0
        %1593 = vmatpush1.bf16.msra.mxu0 %v1340
        %1594 = vmatprep.subr.bf16.mxu0 0
        %1595 = vmatpush1.bf16.msra.mxu0 %v1339
        %1596 = vmatprep.subr.bf16.mxu0 0
        %1597 = vmatpush1.bf16.msra.mxu0 %v1338
        %1598 = vmatprep.subr.bf16.mxu0 0
        %1599 = vmatpush1.bf16.msra.mxu0 %v1337
        %1600 = vmatprep.subr.bf16.mxu0 0
        %1601 = vmatpush1.bf16.msra.mxu0 %v1336
        %1602 = vmatprep.subr.bf16.mxu0 0
        %1603 = vmatpush1.bf16.msra.mxu0 %v1335
        %1604 = vmatprep.subr.bf16.mxu0 0
        %1605 = vmatpush1.bf16.msra.mxu0 %v1334
        %1606 = vmatprep.subr.bf16.mxu0 0
        %1607 = vmatpush2.bf16.msra.mxu0 %v1349
        %1608 = vmatprep.subr.bf16.mxu0 0
        %1609 = vmatpush2.bf16.msra.mxu0 %v1348
        %1610 = vmatprep.subr.bf16.mxu0 0
        %1611 = vmatpush2.bf16.msra.mxu0 %v1347
        %1612 = vmatprep.subr.bf16.mxu0 0
        %1613 = vmatpush2.bf16.msra.mxu0 %v1346
        %1614 = vmatprep.subr.bf16.mxu0 0
        %1615 = vmatpush2.bf16.msra.mxu0 %v1345
        %1616 = vmatprep.subr.bf16.mxu0 0
        %1617 = vmatpush2.bf16.msra.mxu0 %v1344
        %1618 = vmatprep.subr.bf16.mxu0 0
        %1619 = vmatpush2.bf16.msra.mxu0 %v1343
        %1620 = vmatprep.subr.bf16.mxu0 0
        %1621 = vmatpush2.bf16.msra.mxu0 %v1342
        %1622 = vmatprep.mubr.bf16.mxu0 %v547
        %1623 = vmatmul.mubr.bf16.gmra.mxu0 %v546
        %v1624 = vpop.f32.mrf.mxu0
        %v1625 = vadd.f32 %v821, %v1624
        %v1626 = vpop.f32.mrf.mxu0
        %v1627 = vpop.f32.mrf.mxu0
        %v1628 = vpop.f32.mrf.mxu0
        %1629 = vdwg.mxu0
        %1630 = vmatprep.subr.bf16.mxu0 0
        %1631 = vmatpush1.bf16.msra.mxu0 %v1357
        %1632 = vmatprep.subr.bf16.mxu0 0
        %1633 = vmatpush1.bf16.msra.mxu0 %v1356
        %1634 = vmatprep.subr.bf16.mxu0 0
        %1635 = vmatpush1.bf16.msra.mxu0 %v1355
        %1636 = vmatprep.subr.bf16.mxu0 0
        %1637 = vmatpush1.bf16.msra.mxu0 %v1354
        %1638 = vmatprep.subr.bf16.mxu0 0
        %1639 = vmatpush1.bf16.msra.mxu0 %v1353
        %1640 = vmatprep.subr.bf16.mxu0 0
        %1641 = vmatpush1.bf16.msra.mxu0 %v1352
        %1642 = vmatprep.subr.bf16.mxu0 0
        %1643 = vmatpush1.bf16.msra.mxu0 %v1351
        %1644 = vmatprep.subr.bf16.mxu0 0
        %1645 = vmatpush1.bf16.msra.mxu0 %v1350
        %1646 = vmatprep.subr.bf16.mxu0 0
        %1647 = vmatpush2.bf16.msra.mxu0 %v1365
        %1648 = vmatprep.subr.bf16.mxu0 0
        %1649 = vmatpush2.bf16.msra.mxu0 %v1364
        %1650 = vmatprep.subr.bf16.mxu0 0
        %1651 = vmatpush2.bf16.msra.mxu0 %v1363
        %1652 = vmatprep.subr.bf16.mxu0 0
        %1653 = vmatpush2.bf16.msra.mxu0 %v1362
        %1654 = vmatprep.subr.bf16.mxu0 0
        %1655 = vmatpush2.bf16.msra.mxu0 %v1361
        %1656 = vmatprep.subr.bf16.mxu0 0
        %1657 = vmatpush2.bf16.msra.mxu0 %v1360
        %1658 = vmatprep.subr.bf16.mxu0 0
        %1659 = vmatpush2.bf16.msra.mxu0 %v1359
        %1660 = vmatprep.subr.bf16.mxu0 0
        %1661 = vmatpush2.bf16.msra.mxu0 %v1358
        %1662 = vmatprep.mubr.bf16.mxu0 %v549
        %1663 = vmatmul.mubr.bf16.gmra.mxu0 %v548
        %v1664 = vpop.f32.mrf.mxu0
        %v1665 = vadd.f32 %v1625, %v1664
        %v1666 = vpop.f32.mrf.mxu0
        %v1667 = vpop.f32.mrf.mxu0
        %v1668 = vpop.f32.mrf.mxu0
        %1669 = vdwg.mxu0
        %1670 = vmatprep.subr.bf16.mxu0 0
        %1671 = vmatpush1.bf16.msra.mxu0 %v1373
        %1672 = vmatprep.subr.bf16.mxu0 0
        %1673 = vmatpush1.bf16.msra.mxu0 %v1372
        %1674 = vmatprep.subr.bf16.mxu0 0
        %1675 = vmatpush1.bf16.msra.mxu0 %v1371
        %1676 = vmatprep.subr.bf16.mxu0 0
        %1677 = vmatpush1.bf16.msra.mxu0 %v1370
        %1678 = vmatprep.subr.bf16.mxu0 0
        %1679 = vmatpush1.bf16.msra.mxu0 %v1369
        %1680 = vmatprep.subr.bf16.mxu0 0
        %1681 = vmatpush1.bf16.msra.mxu0 %v1368
        %1682 = vmatprep.subr.bf16.mxu0 0
        %1683 = vmatpush1.bf16.msra.mxu0 %v1367
        %1684 = vmatprep.subr.bf16.mxu0 0
        %1685 = vmatpush1.bf16.msra.mxu0 %v1366
        %1686 = vmatprep.subr.bf16.mxu0 0
        %1687 = vmatpush2.bf16.msra.mxu0 %v1381
        %1688 = vmatprep.subr.bf16.mxu0 0
        %1689 = vmatpush2.bf16.msra.mxu0 %v1380
        %1690 = vmatprep.subr.bf16.mxu0 0
        %1691 = vmatpush2.bf16.msra.mxu0 %v1379
        %1692 = vmatprep.subr.bf16.mxu0 0
        %1693 = vmatpush2.bf16.msra.mxu0 %v1378
        %1694 = vmatprep.subr.bf16.mxu0 0
        %1695 = vmatpush2.bf16.msra.mxu0 %v1377
        %1696 = vmatprep.subr.bf16.mxu0 0
        %1697 = vmatpush2.bf16.msra.mxu0 %v1376
        %1698 = vmatprep.subr.bf16.mxu0 0
        %1699 = vmatpush2.bf16.msra.mxu0 %v1375
        %1700 = vmatprep.subr.bf16.mxu0 0
        %1701 = vmatpush2.bf16.msra.mxu0 %v1374
        %1702 = vmatprep.mubr.bf16.mxu0 %v551
        %1703 = vmatmul.mubr.bf16.gmra.mxu0 %v550
        %v1704 = vpop.f32.mrf.mxu0
        %v1705 = vadd.f32 %v1665, %v1704
        %v1706 = vpop.f32.mrf.mxu0
        %v1707 = vpop.f32.mrf.mxu0
        %v1708 = vpop.f32.mrf.mxu0
        %1709 = vdwg.mxu0
        %1710 = vmatprep.subr.bf16.mxu0 0
        %1711 = vmatpush1.bf16.msra.mxu0 %v1389
        %1712 = vmatprep.subr.bf16.mxu0 0
        %1713 = vmatpush1.bf16.msra.mxu0 %v1388
        %1714 = vmatprep.subr.bf16.mxu0 0
        %1715 = vmatpush1.bf16.msra.mxu0 %v1387
        %1716 = vmatprep.subr.bf16.mxu0 0
        %1717 = vmatpush1.bf16.msra.mxu0 %v1386
        %1718 = vmatprep.subr.bf16.mxu0 0
        %1719 = vmatpush1.bf16.msra.mxu0 %v1385
        %1720 = vmatprep.subr.bf16.mxu0 0
        %1721 = vmatpush1.bf16.msra.mxu0 %v1384
        %1722 = vmatprep.subr.bf16.mxu0 0
        %1723 = vmatpush1.bf16.msra.mxu0 %v1383
        %1724 = vmatprep.subr.bf16.mxu0 0
        %1725 = vmatpush1.bf16.msra.mxu0 %v1382
        %1726 = vmatprep.subr.bf16.mxu0 0
        %1727 = vmatpush2.bf16.msra.mxu0 %v1397
        %1728 = vmatprep.subr.bf16.mxu0 0
        %1729 = vmatpush2.bf16.msra.mxu0 %v1396
        %1730 = vmatprep.subr.bf16.mxu0 0
        %1731 = vmatpush2.bf16.msra.mxu0 %v1395
        %1732 = vmatprep.subr.bf16.mxu0 0
        %1733 = vmatpush2.bf16.msra.mxu0 %v1394
        %1734 = vmatprep.subr.bf16.mxu0 0
        %1735 = vmatpush2.bf16.msra.mxu0 %v1393
        %1736 = vmatprep.subr.bf16.mxu0 0
        %1737 = vmatpush2.bf16.msra.mxu0 %v1392
        %1738 = vmatprep.subr.bf16.mxu0 0
        %1739 = vmatpush2.bf16.msra.mxu0 %v1391
        %1740 = vmatprep.subr.bf16.mxu0 0
        %1741 = vmatpush2.bf16.msra.mxu0 %v1390
        %1742 = vmatprep.mubr.bf16.mxu0 %v553
        %1743 = vmatmul.mubr.bf16.gmra.mxu0 %v552
        %v1744 = vpop.f32.mrf.mxu0
        %v1745 = vadd.f32 %v1705, %v1744
        %v1746 = vpop.f32.mrf.mxu0
        %v1747 = vpop.f32.mrf.mxu0
        %v1748 = vpop.f32.mrf.mxu0
        %1749 = vdwg.mxu0
        %1750 = vmatprep.subr.bf16.mxu0 0
        %1751 = vmatpush1.bf16.msra.mxu0 %v1405
        %1752 = vmatprep.subr.bf16.mxu0 0
        %1753 = vmatpush1.bf16.msra.mxu0 %v1404
        %1754 = vmatprep.subr.bf16.mxu0 0
        %1755 = vmatpush1.bf16.msra.mxu0 %v1403
        %1756 = vmatprep.subr.bf16.mxu0 0
        %1757 = vmatpush1.bf16.msra.mxu0 %v1402
        %1758 = vmatprep.subr.bf16.mxu0 0
        %1759 = vmatpush1.bf16.msra.mxu0 %v1401
        %1760 = vmatprep.subr.bf16.mxu0 0
        %1761 = vmatpush1.bf16.msra.mxu0 %v1400
        %1762 = vmatprep.subr.bf16.mxu0 0
        %1763 = vmatpush1.bf16.msra.mxu0 %v1399
        %1764 = vmatprep.subr.bf16.mxu0 0
        %1765 = vmatpush1.bf16.msra.mxu0 %v1398
        %1766 = vmatprep.subr.bf16.mxu0 0
        %1767 = vmatpush2.bf16.msra.mxu0 %v1413
        %1768 = vmatprep.subr.bf16.mxu0 0
        %1769 = vmatpush2.bf16.msra.mxu0 %v1412
        %1770 = vmatprep.subr.bf16.mxu0 0
        %1771 = vmatpush2.bf16.msra.mxu0 %v1411
        %1772 = vmatprep.subr.bf16.mxu0 0
        %1773 = vmatpush2.bf16.msra.mxu0 %v1410
        %1774 = vmatprep.subr.bf16.mxu0 0
        %1775 = vmatpush2.bf16.msra.mxu0 %v1409
        %1776 = vmatprep.subr.bf16.mxu0 0
        %1777 = vmatpush2.bf16.msra.mxu0 %v1408
        %1778 = vmatprep.subr.bf16.mxu0 0
        %1779 = vmatpush2.bf16.msra.mxu0 %v1407
        %1780 = vmatprep.subr.bf16.mxu0 0
        %1781 = vmatpush2.bf16.msra.mxu0 %v1406
        %1782 = vmatprep.mubr.bf16.mxu0 %v555
        %1783 = vmatmul.mubr.bf16.gmra.mxu0 %v554
        %v1784 = vpop.f32.mrf.mxu0
        %v1785 = vadd.f32 %v1745, %v1784
        %v1786 = vpop.f32.mrf.mxu0
        %v1787 = vpop.f32.mrf.mxu0
        %v1788 = vpop.f32.mrf.mxu0
        %1789 = vdwg.mxu0
        %1790 = vmatprep.subr.bf16.mxu0 0
        %1791 = vmatpush1.bf16.msra.mxu0 %v1421
        %1792 = vmatprep.subr.bf16.mxu0 0
        %1793 = vmatpush1.bf16.msra.mxu0 %v1420
        %1794 = vmatprep.subr.bf16.mxu0 0
        %1795 = vmatpush1.bf16.msra.mxu0 %v1419
        %1796 = vmatprep.subr.bf16.mxu0 0
        %1797 = vmatpush1.bf16.msra.mxu0 %v1418
        %1798 = vmatprep.subr.bf16.mxu0 0
        %1799 = vmatpush1.bf16.msra.mxu0 %v1417
        %1800 = vmatprep.subr.bf16.mxu0 0
        %1801 = vmatpush1.bf16.msra.mxu0 %v1416
        %1802 = vmatprep.subr.bf16.mxu0 0
        %1803 = vmatpush1.bf16.msra.mxu0 %v1415
        %1804 = vmatprep.subr.bf16.mxu0 0
        %1805 = vmatpush1.bf16.msra.mxu0 %v1414
        %1806 = vmatprep.subr.bf16.mxu0 0
        %1807 = vmatpush2.bf16.msra.mxu0 %v1429
        %1808 = vmatprep.subr.bf16.mxu0 0
        %1809 = vmatpush2.bf16.msra.mxu0 %v1428
        %1810 = vmatprep.subr.bf16.mxu0 0
        %1811 = vmatpush2.bf16.msra.mxu0 %v1427
        %1812 = vmatprep.subr.bf16.mxu0 0
        %1813 = vmatpush2.bf16.msra.mxu0 %v1426
        %1814 = vmatprep.subr.bf16.mxu0 0
        %1815 = vmatpush2.bf16.msra.mxu0 %v1425
        %1816 = vmatprep.subr.bf16.mxu0 0
        %1817 = vmatpush2.bf16.msra.mxu0 %v1424
        %1818 = vmatprep.subr.bf16.mxu0 0
        %1819 = vmatpush2.bf16.msra.mxu0 %v1423
        %1820 = vmatprep.subr.bf16.mxu0 0
        %1821 = vmatpush2.bf16.msra.mxu0 %v1422
        %1822 = vmatprep.mubr.bf16.mxu0 %v557
        %1823 = vmatmul.mubr.bf16.gmra.mxu0 %v556
        %v1824 = vpop.f32.mrf.mxu0
        %v1825 = vadd.f32 %v1785, %v1824
        %v1826 = vpop.f32.mrf.mxu0
        %v1827 = vpop.f32.mrf.mxu0
        %v1828 = vpop.f32.mrf.mxu0
        %1829 = vdwg.mxu0
        %1830 = vmatprep.subr.bf16.mxu0 0
        %1831 = vmatpush1.bf16.msra.mxu0 %v1437
        %1832 = vmatprep.subr.bf16.mxu0 0
        %1833 = vmatpush1.bf16.msra.mxu0 %v1436
        %1834 = vmatprep.subr.bf16.mxu0 0
        %1835 = vmatpush1.bf16.msra.mxu0 %v1435
        %1836 = vmatprep.subr.bf16.mxu0 0
        %1837 = vmatpush1.bf16.msra.mxu0 %v1434
        %1838 = vmatprep.subr.bf16.mxu0 0
        %1839 = vmatpush1.bf16.msra.mxu0 %v1433
        %1840 = vmatprep.subr.bf16.mxu0 0
        %1841 = vmatpush1.bf16.msra.mxu0 %v1432
        %1842 = vmatprep.subr.bf16.mxu0 0
        %1843 = vmatpush1.bf16.msra.mxu0 %v1431
        %1844 = vmatprep.subr.bf16.mxu0 0
        %1845 = vmatpush1.bf16.msra.mxu0 %v1430
        %1846 = vmatprep.subr.bf16.mxu0 0
        %1847 = vmatpush2.bf16.msra.mxu0 %v1445
        %1848 = vmatprep.subr.bf16.mxu0 0
        %1849 = vmatpush2.bf16.msra.mxu0 %v1444
        %1850 = vmatprep.subr.bf16.mxu0 0
        %1851 = vmatpush2.bf16.msra.mxu0 %v1443
        %1852 = vmatprep.subr.bf16.mxu0 0
        %1853 = vmatpush2.bf16.msra.mxu0 %v1442
        %1854 = vmatprep.subr.bf16.mxu0 0
        %1855 = vmatpush2.bf16.msra.mxu0 %v1441
        %1856 = vmatprep.subr.bf16.mxu0 0
        %1857 = vmatpush2.bf16.msra.mxu0 %v1440
        %1858 = vmatprep.subr.bf16.mxu0 0
        %1859 = vmatpush2.bf16.msra.mxu0 %v1439
        %1860 = vmatprep.subr.bf16.mxu0 0
        %1861 = vmatpush2.bf16.msra.mxu0 %v1438
        %1862 = vmatprep.mubr.bf16.mxu0 %v559
        %1863 = vmatmul.mubr.bf16.gmra.mxu0 %v558
        %v1864 = vpop.f32.mrf.mxu0
        %v1865 = vadd.f32 %v1825, %v1864
        %v1866 = vpop.f32.mrf.mxu0
        %v1867 = vpop.f32.mrf.mxu0
        %v1868 = vpop.f32.mrf.mxu0
        %1869 = vdwg.mxu0
        %1870 = vmatprep.subr.bf16.mxu0 0
        %1871 = vmatpush1.bf16.msra.mxu0 %v1453
        %1872 = vmatprep.subr.bf16.mxu0 0
        %1873 = vmatpush1.bf16.msra.mxu0 %v1452
        %1874 = vmatprep.subr.bf16.mxu0 0
        %1875 = vmatpush1.bf16.msra.mxu0 %v1451
        %1876 = vmatprep.subr.bf16.mxu0 0
        %1877 = vmatpush1.bf16.msra.mxu0 %v1450
        %1878 = vmatprep.subr.bf16.mxu0 0
        %1879 = vmatpush1.bf16.msra.mxu0 %v1449
        %1880 = vmatprep.subr.bf16.mxu0 0
        %1881 = vmatpush1.bf16.msra.mxu0 %v1448
        %1882 = vmatprep.subr.bf16.mxu0 0
        %1883 = vmatpush1.bf16.msra.mxu0 %v1447
        %1884 = vmatprep.subr.bf16.mxu0 0
        %1885 = vmatpush1.bf16.msra.mxu0 %v1446
        %1886 = vmatprep.subr.bf16.mxu0 0
        %1887 = vmatpush2.bf16.msra.mxu0 %v1461
        %1888 = vmatprep.subr.bf16.mxu0 0
        %1889 = vmatpush2.bf16.msra.mxu0 %v1460
        %1890 = vmatprep.subr.bf16.mxu0 0
        %1891 = vmatpush2.bf16.msra.mxu0 %v1459
        %1892 = vmatprep.subr.bf16.mxu0 0
        %1893 = vmatpush2.bf16.msra.mxu0 %v1458
        %1894 = vmatprep.subr.bf16.mxu0 0
        %1895 = vmatpush2.bf16.msra.mxu0 %v1457
        %1896 = vmatprep.subr.bf16.mxu0 0
        %1897 = vmatpush2.bf16.msra.mxu0 %v1456
        %1898 = vmatprep.subr.bf16.mxu0 0
        %1899 = vmatpush2.bf16.msra.mxu0 %v1455
        %1900 = vmatprep.subr.bf16.mxu0 0
        %1901 = vmatpush2.bf16.msra.mxu0 %v1454
        %1902 = vmatprep.mubr.bf16.mxu0 %v561
        %1903 = vmatmul.mubr.bf16.gmra.mxu0 %v560
        %v1904 = vpop.f32.mrf.mxu0
        %v1905 = vadd.f32 %v1865, %v1904
        %v1906 = vpop.f32.mrf.mxu0
        %v1907 = vpop.f32.mrf.mxu0
        %v1908 = vpop.f32.mrf.mxu0
        %1909 = vdwg.mxu0
        %v1910 = vmax.f32 %v1905, 0.0
        %v1911 = vpack.c.bf16 %v1910, %v1910
        %v1912 = vlaneseq
        %v1913 = vshrl.u32 %v1912, 7
        %v1914 = vsub.s32 5, %v1913
        %v1915 = vrot.slane %v268, %v1914
        %v1932 = vunpack.c.l.b16 %v286
        %v1933 = vunpack.c.l.b16 %v287
        %v1934 = vunpack.c.l.b16 %v288
        %v1935 = vunpack.c.l.b16 %v289
        %v1936 = vunpack.c.l.b16 %v290
        %v1937 = vunpack.c.l.b16 %v291
        %v1938 = vunpack.c.l.b16 %v292
        %v1939 = vunpack.c.l.b16 %v293
        %v1940 = vunpack.c.l.b16 %v294
        %v1941 = vunpack.c.l.b16 %v295
        %v1942 = vunpack.c.l.b16 %v296
        %v1943 = vunpack.c.l.b16 %v297
        %v1944 = vunpack.c.l.b16 %v298
        %v1945 = vunpack.c.l.b16 %v299
        %v1946 = vunpack.c.l.b16 %v300
        %v1947 = vunpack.c.l.b16 %v301
        %v1948 = vpack.c.b16 %v1933, %v1932
        %v1949 = vpack.c.b16 %v1935, %v1934
        %v1950 = vpack.c.b16 %v1937, %v1936
        %v1951 = vpack.c.b16 %v1939, %v1938
        %v1952 = vpack.c.b16 %v1941, %v1940
        %v1953 = vpack.c.b16 %v1943, %v1942
        %v1954 = vpack.c.b16 %v1945, %v1944
        %v1955 = vpack.c.b16 %v1947, %v1946
        %1964 = vmatprep.subr.bf16.mxu0 0
        %1965 = vmatpush1.bf16.msra.mxu0 %v1955
        %1966 = vmatprep.subr.bf16.mxu0 0
        %1967 = vmatpush1.bf16.msra.mxu0 %v1954
        %1968 = vmatprep.subr.bf16.mxu0 0
        %1969 = vmatpush1.bf16.msra.mxu0 %v1953
        %1970 = vmatprep.subr.bf16.mxu0 0
        %1971 = vmatpush1.bf16.msra.mxu0 %v1952
        %1972 = vmatprep.subr.bf16.mxu0 0
        %1973 = vmatpush1.bf16.msra.mxu0 %v1951
        %1974 = vmatprep.subr.bf16.mxu0 0
        %1975 = vmatpush1.bf16.msra.mxu0 %v1950
        %1976 = vmatprep.subr.bf16.mxu0 0
        %1977 = vmatpush1.bf16.msra.mxu0 %v1949
        %1978 = vmatprep.subr.bf16.mxu0 0
        %1979 = vmatpush1.bf16.msra.mxu0 %v1948
        %1980 = vmatprep.subr.bf16.mxu0 0
        %1981 = vmatpush2.bf16.msra.mxu0 0
        %1982 = vmatprep.subr.bf16.mxu0 0
        %1983 = vmatpush2.bf16.msra.mxu0 0
        %1984 = vmatprep.subr.bf16.mxu0 0
        %1985 = vmatpush2.bf16.msra.mxu0 0
        %1986 = vmatprep.subr.bf16.mxu0 0
        %1987 = vmatpush2.bf16.msra.mxu0 0
        %1988 = vmatprep.subr.bf16.mxu0 0
        %1989 = vmatpush2.bf16.msra.mxu0 0
        %1990 = vmatprep.subr.bf16.mxu0 0
        %1991 = vmatpush2.bf16.msra.mxu0 0
        %1992 = vmatprep.subr.bf16.mxu0 0
        %1993 = vmatpush2.bf16.msra.mxu0 0
        %1994 = vmatprep.subr.bf16.mxu0 0
        %1995 = vmatpush2.bf16.msra.mxu0 0
        %1996 = vmatprep.mubr.bf16.mxu0 0
        %1997 = vmatmul.mubr.bf16.gmra.mxu0 %v1911
        %v1998 = vpop.f32.mrf.mxu0
        %v1999 = vadd.f32 %v1915, %v1998
        %v2000 = vpop.f32.mrf.mxu0
        %v2001 = vpop.f32.mrf.mxu0
        %v2002 = vpop.f32.mrf.mxu0
        %2003 = vdwg.mxu0
        %2004 = vadd.xlane.f32.xlu0 %v1999
        %v2005 = vpop.xlane.xlu0 %2004
        %v2006 = vmul.f32 %v2005, %v510
        %v2007 = vsub.f32 %v1999, %v2006
        %v2008 = vmul.f32 %v2007, %v2007
        %2009 = vadd.xlane.f32.xlu0 %v2008
        %v2010 = vpop.xlane.xlu0 %2009
        %v2011 = vmul.f32 %v2010, %v510
        %v2012 = vadd.f32 %v2011, 1e-05
        %v2013 = vrsqrt.pop %v2012
        %v2014 = vmul.f32 %v2007, %v2013
        %v2015 = vlaneseq
        %v2016 = vshrl.u32 %v2015, 7
        %v2017 = vsub.s32 6, %v2016
        %v2018 = vrot.slane %v268, %v2017
        %v2019 = vmul.f32 %v2014, %v2018
        %v2020 = vlaneseq
        %v2021 = vshrl.u32 %v2020, 7
        %v2022 = vsub.s32 7, %v2021
        %v2023 = vrot.slane %v268, %v2022
        %v2024 = vadd.f32 %v2019, %v2023
        %v2025 = vadd.f32 %v2024, %v529
        %v2026 = vpack.c.bf16 %v2025, %v2025
        %v2027 = vlaneseq
        %v2028 = vshrl.u32 %v2027, 7
        %v2029 = vsub.s32 0, %v2028
        %v2030 = vrot.slane %v269, %v2029
        %v2047 = vunpack.c.l.b16 %v302
        %v2048 = vunpack.c.l.b16 %v303
        %v2049 = vunpack.c.l.b16 %v304
        %v2050 = vunpack.c.l.b16 %v305
        %v2051 = vunpack.c.l.b16 %v306
        %v2052 = vunpack.c.l.b16 %v307
        %v2053 = vunpack.c.l.b16 %v308
        %v2054 = vunpack.c.l.b16 %v309
        %v2055 = vunpack.c.l.b16 %v310
        %v2056 = vunpack.c.l.b16 %v311
        %v2057 = vunpack.c.l.b16 %v312
        %v2058 = vunpack.c.l.b16 %v313
        %v2059 = vunpack.c.l.b16 %v314
        %v2060 = vunpack.c.l.b16 %v315
        %v2061 = vunpack.c.l.b16 %v316
        %v2062 = vunpack.c.l.b16 %v317
        %v2063 = vpack.c.b16 %v2048, %v2047
        %v2064 = vpack.c.b16 %v2050, %v2049
        %v2065 = vpack.c.b16 %v2052, %v2051
        %v2066 = vpack.c.b16 %v2054, %v2053
        %v2067 = vpack.c.b16 %v2056, %v2055
        %v2068 = vpack.c.b16 %v2058, %v2057
        %v2069 = vpack.c.b16 %v2060, %v2059
        %v2070 = vpack.c.b16 %v2062, %v2061
        %2079 = vmatprep.subr.bf16.mxu0 0
        %2080 = vmatpush1.bf16.msra.mxu0 %v2070
        %2081 = vmatprep.subr.bf16.mxu0 0
        %2082 = vmatpush1.bf16.msra.mxu0 %v2069
        %2083 = vmatprep.subr.bf16.mxu0 0
        %2084 = vmatpush1.bf16.msra.mxu0 %v2068
        %2085 = vmatprep.subr.bf16.mxu0 0
        %2086 = vmatpush1.bf16.msra.mxu0 %v2067
        %2087 = vmatprep.subr.bf16.mxu0 0
        %2088 = vmatpush1.bf16.msra.mxu0 %v2066
        %2089 = vmatprep.subr.bf16.mxu0 0
        %2090 = vmatpush1.bf16.msra.mxu0 %v2065
        %2091 = vmatprep.subr.bf16.mxu0 0
        %2092 = vmatpush1.bf16.msra.mxu0 %v2064
        %2093 = vmatprep.subr.bf16.mxu0 0
        %2094 = vmatpush1.bf16.msra.mxu0 %v2063
        %2095 = vmatprep.subr.bf16.mxu0 0
        %2096 = vmatpush2.bf16.msra.mxu0 0
        %2097 = vmatprep.subr.bf16.mxu0 0
        %2098 = vmatpush2.bf16.msra.mxu0 0
        %2099 = vmatprep.subr.bf16.mxu0 0
        %2100 = vmatpush2.bf16.msra.mxu0 0
        %2101 = vmatprep.subr.bf16.mxu0 0
        %2102 = vmatpush2.bf16.msra.mxu0 0
        %2103 = vmatprep.subr.bf16.mxu0 0
        %2104 = vmatpush2.bf16.msra.mxu0 0
        %2105 = vmatprep.subr.bf16.mxu0 0
        %2106 = vmatpush2.bf16.msra.mxu0 0
        %2107 = vmatprep.subr.bf16.mxu0 0
        %2108 = vmatpush2.bf16.msra.mxu0 0
        %2109 = vmatprep.subr.bf16.mxu0 0
        %2110 = vmatpush2.bf16.msra.mxu0 0
        %2111 = vmatprep.mubr.bf16.mxu0 0
        %2112 = vmatmul.mubr.bf16.gmra.mxu0 %v2026
        %v2113 = vpop.f32.mrf.mxu0
        %v2114 = vadd.f32 %v2030, %v2113
        %v2115 = vpop.f32.mrf.mxu0
        %v2116 = vpop.f32.mrf.mxu0
        %v2117 = vpop.f32.mrf.mxu0
        %2118 = vdwg.mxu0
        %v2119 = vmax.f32 %v2114, 0.0
        %v2120 = vpack.c.bf16 %v2119, %v2119
        %v2121 = vlaneseq
        %v2122 = vshrl.u32 %v2121, 7
        %v2123 = vsub.s32 1, %v2122
        %v2124 = vrot.slane %v269, %v2123
        %v2141 = vunpack.c.l.b16 %v318
        %v2142 = vunpack.c.l.b16 %v319
        %v2143 = vunpack.c.l.b16 %v320
        %v2144 = vunpack.c.l.b16 %v321
        %v2145 = vunpack.c.l.b16 %v322
        %v2146 = vunpack.c.l.b16 %v323
        %v2147 = vunpack.c.l.b16 %v324
        %v2148 = vunpack.c.l.b16 %v325
        %v2149 = vunpack.c.l.b16 %v326
        %v2150 = vunpack.c.l.b16 %v327
        %v2151 = vunpack.c.l.b16 %v328
        %v2152 = vunpack.c.l.b16 %v329
        %v2153 = vunpack.c.l.b16 %v330
        %v2154 = vunpack.c.l.b16 %v331
        %v2155 = vunpack.c.l.b16 %v332
        %v2156 = vunpack.c.l.b16 %v333
        %v2157 = vpack.c.b16 %v2142, %v2141
        %v2158 = vpack.c.b16 %v2144, %v2143
        %v2159 = vpack.c.b16 %v2146, %v2145
        %v2160 = vpack.c.b16 %v2148, %v2147
        %v2161 = vpack.c.b16 %v2150, %v2149
        %v2162 = vpack.c.b16 %v2152, %v2151
        %v2163 = vpack.c.b16 %v2154, %v2153
        %v2164 = vpack.c.b16 %v2156, %v2155
        %2173 = vmatprep.subr.bf16.mxu0 0
        %2174 = vmatpush1.bf16.msra.mxu0 %v2164
        %2175 = vmatprep.subr.bf16.mxu0 0
        %2176 = vmatpush1.bf16.msra.mxu0 %v2163
        %2177 = vmatprep.subr.bf16.mxu0 0
        %2178 = vmatpush1.bf16.msra.mxu0 %v2162
        %2179 = vmatprep.subr.bf16.mxu0 0
        %2180 = vmatpush1.bf16.msra.mxu0 %v2161
        %2181 = vmatprep.subr.bf16.mxu0 0
        %2182 = vmatpush1.bf16.msra.mxu0 %v2160
        %2183 = vmatprep.subr.bf16.mxu0 0
        %2184 = vmatpush1.bf16.msra.mxu0 %v2159
        %2185 = vmatprep.subr.bf16.mxu0 0
        %2186 = vmatpush1.bf16.msra.mxu0 %v2158
        %2187 = vmatprep.subr.bf16.mxu0 0
        %2188 = vmatpush1.bf16.msra.mxu0 %v2157
        %2189 = vmatprep.subr.bf16.mxu0 0
        %2190 = vmatpush2.bf16.msra.mxu0 0
        %2191 = vmatprep.subr.bf16.mxu0 0
        %2192 = vmatpush2.bf16.msra.mxu0 0
        %2193 = vmatprep.subr.bf16.mxu0 0
        %2194 = vmatpush2.bf16.msra.mxu0 0
        %2195 = vmatprep.subr.bf16.mxu0 0
        %2196 = vmatpush2.bf16.msra.mxu0 0
        %2197 = vmatprep.subr.bf16.mxu0 0
        %2198 = vmatpush2.bf16.msra.mxu0 0
        %2199 = vmatprep.subr.bf16.mxu0 0
        %2200 = vmatpush2.bf16.msra.mxu0 0
        %2201 = vmatprep.subr.bf16.mxu0 0
        %2202 = vmatpush2.bf16.msra.mxu0 0
        %2203 = vmatprep.subr.bf16.mxu0 0
        %2204 = vmatpush2.bf16.msra.mxu0 0
        %2205 = vmatprep.mubr.bf16.mxu0 0
        %2206 = vmatmul.mubr.bf16.gmra.mxu0 %v2120
        %v2207 = vpop.f32.mrf.mxu0
        %v2208 = vadd.f32 %v2124, %v2207
        %v2209 = vpop.f32.mrf.mxu0
        %v2210 = vpop.f32.mrf.mxu0
        %v2211 = vpop.f32.mrf.mxu0
        %2212 = vdwg.mxu0
        %2213 = vadd.xlane.f32.xlu0 %v2208
        %v2214 = vpop.xlane.xlu0 %2213
        %v2215 = vmul.f32 %v2214, %v510
        %v2216 = vsub.f32 %v2208, %v2215
        %v2217 = vmul.f32 %v2216, %v2216
        %2218 = vadd.xlane.f32.xlu0 %v2217
        %v2219 = vpop.xlane.xlu0 %2218
        %v2220 = vmul.f32 %v2219, %v510
        %v2221 = vadd.f32 %v2220, 1e-05
        %v2222 = vrsqrt.pop %v2221
        %v2223 = vmul.f32 %v2216, %v2222
        %v2224 = vlaneseq
        %v2225 = vshrl.u32 %v2224, 7
        %v2226 = vsub.s32 2, %v2225
        %v2227 = vrot.slane %v269, %v2226
        %v2228 = vmul.f32 %v2223, %v2227
        %v2229 = vlaneseq
        %v2230 = vshrl.u32 %v2229, 7
        %v2231 = vsub.s32 3, %v2230
        %v2232 = vrot.slane %v269, %v2231
        %v2233 = vadd.f32 %v2228, %v2232
        %2234 = vst [vmem:[%s257] sm:$0xff] %v2233
        %s2235 = sand.u32 %s164, 1
        %s2236 = scalar_lea.sflag [#allocation3], %s2235
        %s2237 = sand.u32 %s164, 1
        %s2238 = smul.addr %s2237, 8
        %s2239 = scalar_lea.vmem [#allocation2], %s2238
        // Predicated region
        $region45: #{image_region_embedder.1} parent=43 // pred_check
          %p2240 = pneg %p174
        $region46: #{image_region_embedder.1} parent=43 // pred_check_branch
          %2242 = sbr.rel (%p2240) target = $region48
        $region47: #{image_region_embedder.1} parent=43 // pred_region
          %s2244 = ssub.s32 128, 128
          %2245 = vsyncadd %s2236, %s2244
          %s2246 = smul.addr %s20, 128
          %s2247 = scalar_lea.hbm %s6, %s2246
          %s2249 = sshll.u32 %s2239, 4
          %s2250 = int_to_ptr.vmem [resolvable:$true] %s2249
          %2252 = dma.vmem_to_hbm [thread:$0]  %s2250, 128, %s2247, %s2236
        $region48: #{image_region_embedder.1} parent=43 // pred_fallthru
          _
      $region44: #{image_region_embedder.1} parent=5 // pred_fallthru
        _
      %p2253 = scmp.le.s32.totalorder 2, %s15
      // Predicated region
      $region49: #{image_region_embedder.1} parent=5 // pred_check
        %p2254 = pneg %p2253
      $region50: #{image_region_embedder.1} parent=5 // pred_check_branch
        %2256 = sbr.rel (%p2254) target = $region52
      $region51: #{image_region_embedder.1} parent=5 // pred_region
        %s2257 = ssub.s32 %s15, 2
        // Predicated region
        $region53: #{image_region_embedder.1} parent=51 // pred_check
          %p2258 = pneg %p180
        $region54: #{image_region_embedder.1} parent=51 // pred_check_branch
          %2260 = sbr.rel (%p2258) target = $region56
        $region55: #{image_region_embedder.1} parent=51 // pred_region
          %s2261 = sand.u32 %s165, 1
          %s2262 = scalar_lea.sflag [#allocation3], %s2261
          %s2263 = sand.u32 %s165, 1
          %s2264 = smul.addr %s2263, 8
          %s2265 = scalar_lea.vmem [#allocation2], %s2264
          %2266 = dma.done %s2262, 128
        $region56: #{image_region_embedder.1} parent=51 // pred_fallthru
          _
      $region52: #{image_region_embedder.1} parent=5 // pred_fallthru
        _
    $region6: #{image_region_embedder.1} parent=1 // loop_footer
      %s19 = sadd.s32 1, %s15
    $region7: #{image_region_embedder.1} parent=1 // loop_footer_branch
      %14 = sbr.rel target = $region3
    $region8: #{image_region_embedder.1} parent=1 // loop_exit
      _
    %2267 = vsyncpa [#allocation3], 1
    %s2268 = scalar_lea.sflag [#allocation3], 1
    %2269 = vsyncpa %s2268, 1

</llo_original>
